<compile_context>
chip_gen: v6e
topology: v6e:2x2x1
jax: 0.10.0
libtpu: 0.0.40
codegen_flags: <defaults>
</compile_context>

<pallas_src>
import functools

import jax
import jax.numpy as jnp
from jax.experimental import pallas as pl
from jax.experimental.pallas import tpu as pltpu

MXU_DTYPE = jnp.bfloat16


def make_lstm_kernel(num_layers: int, hidden: int, seq_len: int, batch: int):
    """Builds a Pallas kernel for a `num_layers`-deep LSTM + FC head."""
    H, T, B, L = hidden, seq_len, batch, num_layers
    H4 = 4 * H

    def kernel(*args):
        # args layout:
        #   x_ref        (T*B, F)   bf16   time-major, flattened
        #   per layer l: w_ih (in_l or 4H, 4H) bf16, w_hh (4H, 4H) bf16,
        #                b (1, 4H) f32     (w_hh and l>0 w_ih zero-padded rows)
        #   w_fc         (4H, P)    bf16   (zero-padded rows)
        #   b_fc         (1, P)     f32
        #   o_ref        (B, P)     f32
        #   proj_buf     (T*B, 4H)  f32    scratch: layer-0 input projection
        x_ref = args[0]
        layer_refs = args[1:1 + 3 * L]
        w_fc_ref = args[1 + 3 * L]
        b_fc_ref = args[2 + 3 * L]
        o_ref = args[3 + 3 * L]
        proj_buf = args[4 + 3 * L]

        # Weights/biases loaded from VMEM exactly once (hoisted).
        w_ih = [layer_refs[3 * l][...] for l in range(L)]
        w_hh = [layer_refs[3 * l + 1][...] for l in range(L)]
        bias = [layer_refs[3 * l + 2][...] for l in range(L)]

        # Layer-0 input projection for ALL timesteps: one batched GEMM + one
        # broadcast bias add, staged to VMEM so the (T*B, 4H) result does not
        # stay live in vregs across the unrolled recurrence.
        proj_buf[...] = (
            jnp.dot(x_ref[...], w_ih[0], preferred_element_type=jnp.float32)
            + bias[0]
        )

        # Recurrent state at full (B, 4H) lane width: c in f32, h in bf16
        # (single cast per step). Lanes [H:4H) carry bounded don't-care values
        # that only ever multiply zero-padded weight rows.
        c = [jnp.zeros((B, H4), jnp.float32) for _ in range(L)]
        h_b = [jnp.zeros((B, H4), MXU_DTYPE) for _ in range(L)]

        def lstm_cell(gates, c_prev, first_step):
            # PyTorch gate order along 4H: [i, f, g, o].
            # Full-width activations (2 EUP passes) + XLU rolls to realign the
            # f/g/o groups to lanes [0, H).
            sig = jax.nn.sigmoid(gates)                    # i | f | . | o
            tnh = jnp.tanh(gates)                          # . | . | g | .
            i_al = sig                                     # i already at [0, H)
            g_al = pltpu.roll(tnh, shift=2 * H, axis=1)    # g -> lanes [0, H)
            o_al = pltpu.roll(sig, shift=1 * H, axis=1)    # o -> lanes [0, H)
            if first_step:                                 # c_prev == 0
                c_new = i_al * g_al
            else:
                f_al = pltpu.roll(sig, shift=3 * H, axis=1)  # f -> lanes [0, H)
                c_new = f_al * c_prev + i_al * g_al
            h_new = o_al * jnp.tanh(c_new)
            return h_new, c_new

        # Wavefront schedule: diagonal step d advances layer l at t = d - l.
        # Layers within one diagonal step are mutually independent (they read
        # only the snapshot h_prev), so the serial chain is T + L - 1 steps.
        for d in range(T + L - 1):
            h_prev = list(h_b)  # snapshot: h_{l, t-1} for every layer
            for l in range(L):
                t = d - l
                if not (0 <= t < T):
                    continue
                if l == 0:
                    gates = proj_buf[t * B:(t + 1) * B, :]       # (B, 4H) f32
                    if t > 0:
                        gates = gates + jnp.dot(
                            h_prev[0], w_hh[0],
                            preferred_element_type=jnp.float32)
                else:
                    # Input (h_{l-1, t}) and recurrent (h_{l, t-1}) projections
                    # fused into this step; both dots are full lane width.
                    gates = bias[l] + jnp.dot(
                        h_prev[l - 1], w_ih[l],
                        preferred_element_type=jnp.float32)
                    if t > 0:
                        gates = gates + jnp.dot(
                            h_prev[l], w_hh[l],
                            preferred_element_type=jnp.float32)
                h_new, c_new = lstm_cell(gates, c[l], t == 0)
                c[l] = c_new
                h_b[l] = h_new.astype(MXU_DTYPE)  # one cast; reused everywhere

        # fc(out[:, -1, :]) == fc(final hidden state of the top layer).
        # (B, P) = (8, 8) output is a single masked store; not worth padding.
        o_ref[...] = (
            jnp.dot(h_b[L - 1], w_fc_ref[...],
                    preferred_element_type=jnp.float32)
            + b_fc_ref[...]
        )

    return kernel


def _pad_rows(w, rows):
    pad = rows - w.shape[0]
    if pad <= 0:
        return w
    return jnp.concatenate([w, jnp.zeros((pad, w.shape[1]), w.dtype)], axis=0)


def prepare_params(params, *, layer_dim, hidden_dim):
    """One-time parameter relayout (hoisted out of the per-call path):
    transpose, cast to bf16, fuse the two LSTM biases, and zero-pad the
    recurrent / layer>0-input / FC weights to 4H rows so the kernel can keep
    its state at full lane width with no narrow slicing."""
    H4 = 4 * hidden_dim
    prepared = []
    for l in range(layer_dim):
        w_ih, w_hh, b_ih, b_hh = params["layers"][l]
        w_ih_t = w_ih.T.astype(MXU_DTYPE)                   # (in_l, 4H)
        if l > 0:
            w_ih_t = _pad_rows(w_ih_t, H4)                  # (4H, 4H)
        w_hh_t = _pad_rows(w_hh.T.astype(MXU_DTYPE), H4)    # (4H, 4H)
        b = (b_ih + b_hh)[None, :].astype(jnp.float32)      # (1, 4H)
        prepared += [w_ih_t, w_hh_t, b]
    prepared.append(_pad_rows(params["fc_w"].T.astype(MXU_DTYPE), H4))  # (4H, P)
    prepared.append(params["fc_b"][None, :].astype(jnp.float32))        # (1, P)
    return prepared


def lstm_forward_pallas(x, dec_inp, prepared, *, layer_dim, hidden_dim,
                        pred_len, feature_size):
    """Mirrors Model.forward(x, dec_inp): LSTM -> fc(last step) -> reshape.
    `dec_inp` is accepted and ignored, exactly like the PyTorch forward."""
    del dec_inp  # intentionally unused (matches the reference module)
    B, T, F = x.shape
    # Time-major flatten: timestep t occupies rows [t*B, (t+1)*B).
    x_flat = jnp.transpose(x, (1, 0, 2)).reshape(T * B, F).astype(MXU_DTYPE)
    inputs = [x_flat] + list(prepared)

    kernel = make_lstm_kernel(layer_dim, hidden_dim, T, B)
    y = pl.pallas_call(
        kernel,
        out_shape=jax.ShapeDtypeStruct((B, pred_len), jnp.float32),
        in_specs=[pl.BlockSpec(memory_space=pltpu.MemorySpace.VMEM)] * len(inputs),
        out_specs=pl.BlockSpec(memory_space=pltpu.MemorySpace.VMEM),
        scratch_shapes=[
            pltpu.VMEM((T * B, 4 * hidden_dim), jnp.float32),  # layer-0 proj
        ],
    )(*inputs)

    # out.reshape(-1, self.output_dim, self.feature_size)
    return y.reshape(-1, pred_len, feature_size)


def init_params(key, *, feature_size, hidden_dim, layer_dim, pred_len):
    """PyTorch-style uniform(-1/sqrt(H), 1/sqrt(H)) init, deterministic."""
    k = 1.0 / jnp.sqrt(jnp.float32(hidden_dim))
    layers = []
    for l in range(layer_dim):
        in_dim = feature_size if l == 0 else hidden_dim
        key, k1, k2, k3, k4 = jax.random.split(key, 5)
        w_ih = jax.random.uniform(k1, (4 * hidden_dim, in_dim), jnp.float32, -k, k)
        w_hh = jax.random.uniform(k2, (4 * hidden_dim, hidden_dim), jnp.float32, -k, k)
        b_ih = jax.random.uniform(k3, (4 * hidden_dim,), jnp.float32, -k, k)
        b_hh = jax.random.uniform(k4, (4 * hidden_dim,), jnp.float32, -k, k)
        layers.append((w_ih, w_hh, b_ih, b_hh))
    key, k5, k6 = jax.random.split(key, 3)
    fc_w = jax.random.uniform(k5, (pred_len, hidden_dim), jnp.float32, -k, k)
    fc_b = jax.random.uniform(k6, (pred_len,), jnp.float32, -k, k)
    return {"layers": layers, "fc_w": fc_w, "fc_b": fc_b}


def lstm_forward_reference(x, params, *, layer_dim, hidden_dim, pred_len, feature_size):
    """Pure-JAX f32 reference with the same semantics (sanity check)."""
    B, T, F = x.shape
    H = hidden_dim
    h = [jnp.zeros((B, H), jnp.float32) for _ in range(layer_dim)]
    c = [jnp.zeros((B, H), jnp.float32) for _ in range(layer_dim)]
    for t in range(T):
        inp = x[:, t, :]
        for l in range(layer_dim):
            w_ih, w_hh, b_ih, b_hh = params["layers"][l]
            gates = inp @ w_ih.T + h[l] @ w_hh.T + b_ih + b_hh
            i_g = jax.nn.sigmoid(gates[:, 0 * H:1 * H])
            f_g = jax.nn.sigmoid(gates[:, 1 * H:2 * H])
            g_g = jnp.tanh(gates[:, 2 * H:3 * H])
            o_g = jax.nn.sigmoid(gates[:, 3 * H:4 * H])
            c[l] = f_g * c[l] + i_g * g_g
            h[l] = o_g * jnp.tanh(c[l])
            inp = h[l]
    y = h[layer_dim - 1] @ params["fc_w"].T + params["fc_b"]
    return y.reshape(-1, pred_len, feature_size)


if __name__ == "__main__":
    # Small config consistent with the module (args): seq_len=8, feature_size=4,
    # pred_len=8, hidden_dim=32 (-> 4H = 128 lanes), layer_dim=2, batch=8.
    SEQ_LEN, FEATURE, PRED, HIDDEN, LAYERS, BATCH = 8, 4, 8, 32, 2, 8

    key = jax.random.PRNGKey(0)
    key, kx, kd, kp = jax.random.split(key, 4)
    x = jax.random.normal(kx, (BATCH, SEQ_LEN, FEATURE), jnp.float32)
    dec_inp = jax.random.normal(kd, (BATCH, PRED, FEATURE), jnp.float32)  # ignored, as in forward()
    params = init_params(kp, feature_size=FEATURE, hidden_dim=HIDDEN,
                         layer_dim=LAYERS, pred_len=PRED)
    prepared = prepare_params(params, layer_dim=LAYERS, hidden_dim=HIDDEN)

    fwd = jax.jit(functools.partial(
        lstm_forward_pallas, layer_dim=LAYERS, hidden_dim=HIDDEN,
        pred_len=PRED, feature_size=FEATURE))
    out = jax.block_until_ready(fwd(x, dec_inp, prepared))

    ref = lstm_forward_reference(
        x, params, layer_dim=LAYERS, hidden_dim=HIDDEN,
        pred_len=PRED, feature_size=FEATURE)

    assert out.shape == ref.shape, (out.shape, ref.shape)
    # bf16 MXU operands (f32 accumulation & f32 cell state) vs pure-f32 reference.
    assert jnp.allclose(out, ref, atol=3e-2, rtol=3e-2), float(jnp.max(jnp.abs(out - ref)))

    print("KERNEL_OK")
</pallas_src>

<mosaic_0001>
module attributes {stable_mosaic.version = 11 : i64} {
  func.func @kernel(%arg0: memref<64x4xbf16, #tpu.memory_space<vmem>>, %arg1: memref<4x128xbf16, #tpu.memory_space<vmem>>, %arg2: memref<128x128xbf16, #tpu.memory_space<vmem>>, %arg3: memref<1x128xf32, #tpu.memory_space<vmem>>, %arg4: memref<128x128xbf16, #tpu.memory_space<vmem>>, %arg5: memref<128x128xbf16, #tpu.memory_space<vmem>>, %arg6: memref<1x128xf32, #tpu.memory_space<vmem>>, %arg7: memref<128x8xbf16, #tpu.memory_space<vmem>>, %arg8: memref<1x8xf32, #tpu.memory_space<vmem>>, %arg9: memref<8x8xf32, #tpu.memory_space<vmem>>, %arg10: memref<64x128xf32, #tpu.memory_space<vmem>>) attributes {dimension_semantics = [], scalar_prefetch = 0 : i64, scratch_operands = 1 : i64, tpu.core_type = #tpu.core_type<tc>} {
    %c0 = arith.constant 0 : index
    %c0_0 = arith.constant 0 : index
    %0 = vector.load %arg1[%c0, %c0_0] : memref<4x128xbf16, #tpu.memory_space<vmem>>, vector<4x128xbf16>
    %c0_1 = arith.constant 0 : index
    %c0_2 = arith.constant 0 : index
    %1 = vector.load %arg4[%c0_1, %c0_2] : memref<128x128xbf16, #tpu.memory_space<vmem>>, vector<128x128xbf16>
    %c0_3 = arith.constant 0 : index
    %c0_4 = arith.constant 0 : index
    %2 = vector.load %arg2[%c0_3, %c0_4] : memref<128x128xbf16, #tpu.memory_space<vmem>>, vector<128x128xbf16>
    %c0_5 = arith.constant 0 : index
    %c0_6 = arith.constant 0 : index
    %3 = vector.load %arg5[%c0_5, %c0_6] : memref<128x128xbf16, #tpu.memory_space<vmem>>, vector<128x128xbf16>
    %c0_7 = arith.constant 0 : index
    %c0_8 = arith.constant 0 : index
    %4 = vector.load %arg3[%c0_7, %c0_8] : memref<1x128xf32, #tpu.memory_space<vmem>>, vector<1x128xf32>
    %c0_9 = arith.constant 0 : index
    %c0_10 = arith.constant 0 : index
    %5 = vector.load %arg6[%c0_9, %c0_10] : memref<1x128xf32, #tpu.memory_space<vmem>>, vector<1x128xf32>
    %c0_11 = arith.constant 0 : index
    %c0_12 = arith.constant 0 : index
    %6 = vector.load %arg0[%c0_11, %c0_12] : memref<64x4xbf16, #tpu.memory_space<vmem>>, vector<64x4xbf16>
    %cst = arith.constant dense<0.000000e+00> : vector<64x128xf32>
    %7 = tpu.matmul %6, %0, %cst {dimension_numbers = #tpu.dot_dimension_numbers<[1], [0], [0], [1], [0, 0, 1, 1], [], []>} : vector<64x4xbf16>, vector<4x128xbf16>, vector<64x128xf32> -> vector<64x128xf32>
    %8 = vector.broadcast %4 : vector<1x128xf32> to vector<64x128xf32>
    %9 = arith.addf %7, %8 : vector<64x128xf32>
    %c0_13 = arith.constant 0 : index
    %c0_14 = arith.constant 0 : index
    %10 = vector.load %arg10[%c0_13, %c0_14] : memref<64x128xf32, #tpu.memory_space<vmem>>, vector<64x128xf32>
    tpu.vector_store %arg10[%c0_13, %c0_14], %9 {strides = array<i32>} : memref<64x128xf32, #tpu.memory_space<vmem>>, vector<64x128xf32>,
    %c0_15 = arith.constant 0 : index
    %c0_16 = arith.constant 0 : index
    %11 = vector.load %arg10[%c0_15, %c0_16] : memref<64x128xf32, #tpu.memory_space<vmem>>, vector<8x128xf32>
    %12 = arith.negf %11 : vector<8x128xf32>
    %13 = math.exp %12 : vector<8x128xf32>
    %cst_17 = arith.constant 1.000000e+00 : f32
    %14 = vector.broadcast %cst_17 : f32 to vector<8x128xf32>
    %15 = arith.addf %14, %13 : vector<8x128xf32>
    %16 = arith.divf %14, %15 : vector<8x128xf32>
    %17 = math.tanh %11 : vector<8x128xf32>
    %c64_i32 = arith.constant 64 : i32
    %18 = tpu.dynamic_rotate %17 by %c64_i32 dim 1 : vector<8x128xf32>, i32 -> vector<8x128xf32>
    %c32_i32 = arith.constant 32 : i32
    %19 = tpu.dynamic_rotate %16 by %c32_i32 dim 1 : vector<8x128xf32>, i32 -> vector<8x128xf32>
    %20 = arith.mulf %16, %18 : vector<8x128xf32>
    %21 = math.tanh %20 : vector<8x128xf32>
    %22 = arith.mulf %19, %21 : vector<8x128xf32>
    %23 = arith.truncf %22 : vector<8x128xf32> to vector<8x128xbf16>
    %c8 = arith.constant 8 : index
    %c0_18 = arith.constant 0 : index
    %24 = vector.load %arg10[%c8, %c0_18] : memref<64x128xf32, #tpu.memory_space<vmem>>, vector<8x128xf32>
    %cst_19 = arith.constant dense<0.000000e+00> : vector<8x128xf32>
    %25 = tpu.matmul %23, %2, %cst_19 {dimension_numbers = #tpu.dot_dimension_numbers<[1], [0], [0], [1], [0, 0, 1, 1], [], []>} : vector<8x128xbf16>, vector<128x128xbf16>, vector<8x128xf32> -> vector<8x128xf32>
    %26 = arith.addf %24, %25 : vector<8x128xf32>
    %27 = arith.negf %26 : vector<8x128xf32>
    %28 = math.exp %27 : vector<8x128xf32>
    %cst_20 = arith.constant 1.000000e+00 : f32
    %29 = vector.broadcast %cst_20 : f32 to vector<8x128xf32>
    %30 = arith.addf %29, %28 : vector<8x128xf32>
    %31 = arith.divf %29, %30 : vector<8x128xf32>
    %32 = math.tanh %26 : vector<8x128xf32>
    %c64_i32_21 = arith.constant 64 : i32
    %33 = tpu.dynamic_rotate %32 by %c64_i32_21 dim 1 : vector<8x128xf32>, i32 -> vector<8x128xf32>
    %c32_i32_22 = arith.constant 32 : i32
    %34 = tpu.dynamic_rotate %31 by %c32_i32_22 dim 1 : vector<8x128xf32>, i32 -> vector<8x128xf32>
    %c96_i32 = arith.constant 96 : i32
    %35 = tpu.dynamic_rotate %31 by %c96_i32 dim 1 : vector<8x128xf32>, i32 -> vector<8x128xf32>
    %36 = arith.mulf %35, %20 : vector<8x128xf32>
    %37 = arith.mulf %31, %33 : vector<8x128xf32>
    %38 = arith.addf %36, %37 : vector<8x128xf32>
    %39 = math.tanh %38 : vector<8x128xf32>
    %40 = arith.mulf %34, %39 : vector<8x128xf32>
    %41 = arith.truncf %40 : vector<8x128xf32> to vector<8x128xbf16>
    %cst_23 = arith.constant dense<0.000000e+00> : vector<8x128xf32>
    %42 = tpu.matmul %23, %1, %cst_23 {dimension_numbers = #tpu.dot_dimension_numbers<[1], [0], [0], [1], [0, 0, 1, 1], [], []>} : vector<8x128xbf16>, vector<128x128xbf16>, vector<8x128xf32> -> vector<8x128xf32>
    %43 = vector.broadcast %5 : vector<1x128xf32> to vector<8x128xf32>
    %44 = arith.addf %43, %42 : vector<8x128xf32>
    %45 = arith.negf %44 : vector<8x128xf32>
    %46 = math.exp %45 : vector<8x128xf32>
    %cst_24 = arith.constant 1.000000e+00 : f32
    %47 = vector.broadcast %cst_24 : f32 to vector<8x128xf32>
    %48 = arith.addf %47, %46 : vector<8x128xf32>
    %49 = arith.divf %47, %48 : vector<8x128xf32>
    %50 = math.tanh %44 : vector<8x128xf32>
    %c64_i32_25 = arith.constant 64 : i32
    %51 = tpu.dynamic_rotate %50 by %c64_i32_25 dim 1 : vector<8x128xf32>, i32 -> vector<8x128xf32>
    %c32_i32_26 = arith.constant 32 : i32
    %52 = tpu.dynamic_rotate %49 by %c32_i32_26 dim 1 : vector<8x128xf32>, i32 -> vector<8x128xf32>
    %53 = arith.mulf %49, %51 : vector<8x128xf32>
    %54 = math.tanh %53 : vector<8x128xf32>
    %55 = arith.mulf %52, %54 : vector<8x128xf32>
    %56 = arith.truncf %55 : vector<8x128xf32> to vector<8x128xbf16>
    %c16 = arith.constant 16 : index
    %c0_27 = arith.constant 0 : index
    %57 = vector.load %arg10[%c16, %c0_27] : memref<64x128xf32, #tpu.memory_space<vmem>>, vector<8x128xf32>
    %cst_28 = arith.constant dense<0.000000e+00> : vector<8x128xf32>
    %58 = tpu.matmul %41, %2, %cst_28 {dimension_numbers = #tpu.dot_dimension_numbers<[1], [0], [0], [1], [0, 0, 1, 1], [], []>} : vector<8x128xbf16>, vector<128x128xbf16>, vector<8x128xf32> -> vector<8x128xf32>
    %59 = arith.addf %57, %58 : vector<8x128xf32>
    %60 = arith.negf %59 : vector<8x128xf32>
    %61 = math.exp %60 : vector<8x128xf32>
    %cst_29 = arith.constant 1.000000e+00 : f32
    %62 = vector.broadcast %cst_29 : f32 to vector<8x128xf32>
    %63 = arith.addf %62, %61 : vector<8x128xf32>
    %64 = arith.divf %62, %63 : vector<8x128xf32>
    %65 = math.tanh %59 : vector<8x128xf32>
    %c64_i32_30 = arith.constant 64 : i32
    %66 = tpu.dynamic_rotate %65 by %c64_i32_30 dim 1 : vector<8x128xf32>, i32 -> vector<8x128xf32>
    %c32_i32_31 = arith.constant 32 : i32
    %67 = tpu.dynamic_rotate %64 by %c32_i32_31 dim 1 : vector<8x128xf32>, i32 -> vector<8x128xf32>
    %c96_i32_32 = arith.constant 96 : i32
    %68 = tpu.dynamic_rotate %64 by %c96_i32_32 dim 1 : vector<8x128xf32>, i32 -> vector<8x128xf32>
    %69 = arith.mulf %68, %38 : vector<8x128xf32>
    %70 = arith.mulf %64, %66 : vector<8x128xf32>
    %71 = arith.addf %69, %70 : vector<8x128xf32>
    %72 = math.tanh %71 : vector<8x128xf32>
    %73 = arith.mulf %67, %72 : vector<8x128xf32>
    %74 = arith.truncf %73 : vector<8x128xf32> to vector<8x128xbf16>
    %cst_33 = arith.constant dense<0.000000e+00> : vector<8x128xf32>
    %75 = tpu.matmul %41, %1, %cst_33 {dimension_numbers = #tpu.dot_dimension_numbers<[1], [0], [0], [1], [0, 0, 1, 1], [], []>} : vector<8x128xbf16>, vector<128x128xbf16>, vector<8x128xf32> -> vector<8x128xf32>
    %76 = vector.broadcast %5 : vector<1x128xf32> to vector<8x128xf32>
    %77 = arith.addf %76, %75 : vector<8x128xf32>
    %cst_34 = arith.constant dense<0.000000e+00> : vector<8x128xf32>
    %78 = tpu.matmul %56, %3, %cst_34 {dimension_numbers = #tpu.dot_dimension_numbers<[1], [0], [0], [1], [0, 0, 1, 1], [], []>} : vector<8x128xbf16>, vector<128x128xbf16>, vector<8x128xf32> -> vector<8x128xf32>
    %79 = arith.addf %77, %78 : vector<8x128xf32>
    %80 = arith.negf %79 : vector<8x128xf32>
    %81 = math.exp %80 : vector<8x128xf32>
    %cst_35 = arith.constant 1.000000e+00 : f32
    %82 = vector.broadcast %cst_35 : f32 to vector<8x128xf32>
    %83 = arith.addf %82, %81 : vector<8x128xf32>
    %84 = arith.divf %82, %83 : vector<8x128xf32>
    %85 = math.tanh %79 : vector<8x128xf32>
    %c64_i32_36 = arith.constant 64 : i32
    %86 = tpu.dynamic_rotate %85 by %c64_i32_36 dim 1 : vector<8x128xf32>, i32 -> vector<8x128xf32>
    %c32_i32_37 = arith.constant 32 : i32
    %87 = tpu.dynamic_rotate %84 by %c32_i32_37 dim 1 : vector<8x128xf32>, i32 -> vector<8x128xf32>
    %c96_i32_38 = arith.constant 96 : i32
    %88 = tpu.dynamic_rotate %84 by %c96_i32_38 dim 1 : vector<8x128xf32>, i32 -> vector<8x128xf32>
    %89 = arith.mulf %88, %53 : vector<8x128xf32>
    %90 = arith.mulf %84, %86 : vector<8x128xf32>
    %91 = arith.addf %89, %90 : vector<8x128xf32>
    %92 = math.tanh %91 : vector<8x128xf32>
    %93 = arith.mulf %87, %92 : vector<8x128xf32>
    %94 = arith.truncf %93 : vector<8x128xf32> to vector<8x128xbf16>
    %c24 = arith.constant 24 : index
    %c0_39 = arith.constant 0 : index
    %95 = vector.load %arg10[%c24, %c0_39] : memref<64x128xf32, #tpu.memory_space<vmem>>, vector<8x128xf32>
    %cst_40 = arith.constant dense<0.000000e+00> : vector<8x128xf32>
    %96 = tpu.matmul %74, %2, %cst_40 {dimension_numbers = #tpu.dot_dimension_numbers<[1], [0], [0], [1], [0, 0, 1, 1], [], []>} : vector<8x128xbf16>, vector<128x128xbf16>, vector<8x128xf32> -> vector<8x128xf32>
    %97 = arith.addf %95, %96 : vector<8x128xf32>
    %98 = arith.negf %97 : vector<8x128xf32>
    %99 = math.exp %98 : vector<8x128xf32>
    %cst_41 = arith.constant 1.000000e+00 : f32
    %100 = vector.broadcast %cst_41 : f32 to vector<8x128xf32>
    %101 = arith.addf %100, %99 : vector<8x128xf32>
    %102 = arith.divf %100, %101 : vector<8x128xf32>
    %103 = math.tanh %97 : vector<8x128xf32>
    %c64_i32_42 = arith.constant 64 : i32
    %104 = tpu.dynamic_rotate %103 by %c64_i32_42 dim 1 : vector<8x128xf32>, i32 -> vector<8x128xf32>
    %c32_i32_43 = arith.constant 32 : i32
    %105 = tpu.dynamic_rotate %102 by %c32_i32_43 dim 1 : vector<8x128xf32>, i32 -> vector<8x128xf32>
    %c96_i32_44 = arith.constant 96 : i32
    %106 = tpu.dynamic_rotate %102 by %c96_i32_44 dim 1 : vector<8x128xf32>, i32 -> vector<8x128xf32>
    %107 = arith.mulf %106, %71 : vector<8x128xf32>
    %108 = arith.mulf %102, %104 : vector<8x128xf32>
    %109 = arith.addf %107, %108 : vector<8x128xf32>
    %110 = math.tanh %109 : vector<8x128xf32>
    %111 = arith.mulf %105, %110 : vector<8x128xf32>
    %112 = arith.truncf %111 : vector<8x128xf32> to vector<8x128xbf16>
    %cst_45 = arith.constant dense<0.000000e+00> : vector<8x128xf32>
    %113 = tpu.matmul %74, %1, %cst_45 {dimension_numbers = #tpu.dot_dimension_numbers<[1], [0], [0], [1], [0, 0, 1, 1], [], []>} : vector<8x128xbf16>, vector<128x128xbf16>, vector<8x128xf32> -> vector<8x128xf32>
    %114 = vector.broadcast %5 : vector<1x128xf32> to vector<8x128xf32>
    %115 = arith.addf %114, %113 : vector<8x128xf32>
    %cst_46 = arith.constant dense<0.000000e+00> : vector<8x128xf32>
    %116 = tpu.matmul %94, %3, %cst_46 {dimension_numbers = #tpu.dot_dimension_numbers<[1], [0], [0], [1], [0, 0, 1, 1], [], []>} : vector<8x128xbf16>, vector<128x128xbf16>, vector<8x128xf32> -> vector<8x128xf32>
    %117 = arith.addf %115, %116 : vector<8x128xf32>
    %118 = arith.negf %117 : vector<8x128xf32>
    %119 = math.exp %118 : vector<8x128xf32>
    %cst_47 = arith.constant 1.000000e+00 : f32
    %120 = vector.broadcast %cst_47 : f32 to vector<8x128xf32>
    %121 = arith.addf %120, %119 : vector<8x128xf32>
    %122 = arith.divf %120, %121 : vector<8x128xf32>
    %123 = math.tanh %117 : vector<8x128xf32>
    %c64_i32_48 = arith.constant 64 : i32
    %124 = tpu.dynamic_rotate %123 by %c64_i32_48 dim 1 : vector<8x128xf32>, i32 -> vector<8x128xf32>
    %c32_i32_49 = arith.constant 32 : i32
    %125 = tpu.dynamic_rotate %122 by %c32_i32_49 dim 1 : vector<8x128xf32>, i32 -> vector<8x128xf32>
    %c96_i32_50 = arith.constant 96 : i32
    %126 = tpu.dynamic_rotate %122 by %c96_i32_50 dim 1 : vector<8x128xf32>, i32 -> vector<8x128xf32>
    %127 = arith.mulf %126, %91 : vector<8x128xf32>
    %128 = arith.mulf %122, %124 : vector<8x128xf32>
    %129 = arith.addf %127, %128 : vector<8x128xf32>
    %130 = math.tanh %129 : vector<8x128xf32>
    %131 = arith.mulf %125, %130 : vector<8x128xf32>
    %132 = arith.truncf %131 : vector<8x128xf32> to vector<8x128xbf16>
    %c32 = arith.constant 32 : index
    %c0_51 = arith.constant 0 : index
    %133 = vector.load %arg10[%c32, %c0_51] : memref<64x128xf32, #tpu.memory_space<vmem>>, vector<8x128xf32>
    %cst_52 = arith.constant dense<0.000000e+00> : vector<8x128xf32>
    %134 = tpu.matmul %112, %2, %cst_52 {dimension_numbers = #tpu.dot_dimension_numbers<[1], [0], [0], [1], [0, 0, 1, 1], [], []>} : vector<8x128xbf16>, vector<128x128xbf16>, vector<8x128xf32> -> vector<8x128xf32>
    %135 = arith.addf %133, %134 : vector<8x128xf32>
    %136 = arith.negf %135 : vector<8x128xf32>
    %137 = math.exp %136 : vector<8x128xf32>
    %cst_53 = arith.constant 1.000000e+00 : f32
    %138 = vector.broadcast %cst_53 : f32 to vector<8x128xf32>
    %139 = arith.addf %138, %137 : vector<8x128xf32>
    %140 = arith.divf %138, %139 : vector<8x128xf32>
    %141 = math.tanh %135 : vector<8x128xf32>
    %c64_i32_54 = arith.constant 64 : i32
    %142 = tpu.dynamic_rotate %141 by %c64_i32_54 dim 1 : vector<8x128xf32>, i32 -> vector<8x128xf32>
    %c32_i32_55 = arith.constant 32 : i32
    %143 = tpu.dynamic_rotate %140 by %c32_i32_55 dim 1 : vector<8x128xf32>, i32 -> vector<8x128xf32>
    %c96_i32_56 = arith.constant 96 : i32
    %144 = tpu.dynamic_rotate %140 by %c96_i32_56 dim 1 : vector<8x128xf32>, i32 -> vector<8x128xf32>
    %145 = arith.mulf %144, %109 : vector<8x128xf32>
    %146 = arith.mulf %140, %142 : vector<8x128xf32>
    %147 = arith.addf %145, %146 : vector<8x128xf32>
    %148 = math.tanh %147 : vector<8x128xf32>
    %149 = arith.mulf %143, %148 : vector<8x128xf32>
    %150 = arith.truncf %149 : vector<8x128xf32> to vector<8x128xbf16>
    %cst_57 = arith.constant dense<0.000000e+00> : vector<8x128xf32>
    %151 = tpu.matmul %112, %1, %cst_57 {dimension_numbers = #tpu.dot_dimension_numbers<[1], [0], [0], [1], [0, 0, 1, 1], [], []>} : vector<8x128xbf16>, vector<128x128xbf16>, vector<8x128xf32> -> vector<8x128xf32>
    %152 = vector.broadcast %5 : vector<1x128xf32> to vector<8x128xf32>
    %153 = arith.addf %152, %151 : vector<8x128xf32>
    %cst_58 = arith.constant dense<0.000000e+00> : vector<8x128xf32>
    %154 = tpu.matmul %132, %3, %cst_58 {dimension_numbers = #tpu.dot_dimension_numbers<[1], [0], [0], [1], [0, 0, 1, 1], [], []>} : vector<8x128xbf16>, vector<128x128xbf16>, vector<8x128xf32> -> vector<8x128xf32>
    %155 = arith.addf %153, %154 : vector<8x128xf32>
    %156 = arith.negf %155 : vector<8x128xf32>
    %157 = math.exp %156 : vector<8x128xf32>
    %cst_59 = arith.constant 1.000000e+00 : f32
    %158 = vector.broadcast %cst_59 : f32 to vector<8x128xf32>
    %159 = arith.addf %158, %157 : vector<8x128xf32>
    %160 = arith.divf %158, %159 : vector<8x128xf32>
    %161 = math.tanh %155 : vector<8x128xf32>
    %c64_i32_60 = arith.constant 64 : i32
    %162 = tpu.dynamic_rotate %161 by %c64_i32_60 dim 1 : vector<8x128xf32>, i32 -> vector<8x128xf32>
    %c32_i32_61 = arith.constant 32 : i32
    %163 = tpu.dynamic_rotate %160 by %c32_i32_61 dim 1 : vector<8x128xf32>, i32 -> vector<8x128xf32>
    %c96_i32_62 = arith.constant 96 : i32
    %164 = tpu.dynamic_rotate %160 by %c96_i32_62 dim 1 : vector<8x128xf32>, i32 -> vector<8x128xf32>
    %165 = arith.mulf %164, %129 : vector<8x128xf32>
    %166 = arith.mulf %160, %162 : vector<8x128xf32>
    %167 = arith.addf %165, %166 : vector<8x128xf32>
    %168 = math.tanh %167 : vector<8x128xf32>
    %169 = arith.mulf %163, %168 : vector<8x128xf32>
    %170 = arith.truncf %169 : vector<8x128xf32> to vector<8x128xbf16>
    %c40 = arith.constant 40 : index
    %c0_63 = arith.constant 0 : index
    %171 = vector.load %arg10[%c40, %c0_63] : memref<64x128xf32, #tpu.memory_space<vmem>>, vector<8x128xf32>
    %cst_64 = arith.constant dense<0.000000e+00> : vector<8x128xf32>
    %172 = tpu.matmul %150, %2, %cst_64 {dimension_numbers = #tpu.dot_dimension_numbers<[1], [0], [0], [1], [0, 0, 1, 1], [], []>} : vector<8x128xbf16>, vector<128x128xbf16>, vector<8x128xf32> -> vector<8x128xf32>
    %173 = arith.addf %171, %172 : vector<8x128xf32>
    %174 = arith.negf %173 : vector<8x128xf32>
    %175 = math.exp %174 : vector<8x128xf32>
    %cst_65 = arith.constant 1.000000e+00 : f32
    %176 = vector.broadcast %cst_65 : f32 to vector<8x128xf32>
    %177 = arith.addf %176, %175 : vector<8x128xf32>
    %178 = arith.divf %176, %177 : vector<8x128xf32>
    %179 = math.tanh %173 : vector<8x128xf32>
    %c64_i32_66 = arith.constant 64 : i32
    %180 = tpu.dynamic_rotate %179 by %c64_i32_66 dim 1 : vector<8x128xf32>, i32 -> vector<8x128xf32>
    %c32_i32_67 = arith.constant 32 : i32
    %181 = tpu.dynamic_rotate %178 by %c32_i32_67 dim 1 : vector<8x128xf32>, i32 -> vector<8x128xf32>
    %c96_i32_68 = arith.constant 96 : i32
    %182 = tpu.dynamic_rotate %178 by %c96_i32_68 dim 1 : vector<8x128xf32>, i32 -> vector<8x128xf32>
    %183 = arith.mulf %182, %147 : vector<8x128xf32>
    %184 = arith.mulf %178, %180 : vector<8x128xf32>
    %185 = arith.addf %183, %184 : vector<8x128xf32>
    %186 = math.tanh %185 : vector<8x128xf32>
    %187 = arith.mulf %181, %186 : vector<8x128xf32>
    %188 = arith.truncf %187 : vector<8x128xf32> to vector<8x128xbf16>
    %cst_69 = arith.constant dense<0.000000e+00> : vector<8x128xf32>
    %189 = tpu.matmul %150, %1, %cst_69 {dimension_numbers = #tpu.dot_dimension_numbers<[1], [0], [0], [1], [0, 0, 1, 1], [], []>} : vector<8x128xbf16>, vector<128x128xbf16>, vector<8x128xf32> -> vector<8x128xf32>
    %190 = vector.broadcast %5 : vector<1x128xf32> to vector<8x128xf32>
    %191 = arith.addf %190, %189 : vector<8x128xf32>
    %cst_70 = arith.constant dense<0.000000e+00> : vector<8x128xf32>
    %192 = tpu.matmul %170, %3, %cst_70 {dimension_numbers = #tpu.dot_dimension_numbers<[1], [0], [0], [1], [0, 0, 1, 1], [], []>} : vector<8x128xbf16>, vector<128x128xbf16>, vector<8x128xf32> -> vector<8x128xf32>
    %193 = arith.addf %191, %192 : vector<8x128xf32>
    %194 = arith.negf %193 : vector<8x128xf32>
    %195 = math.exp %194 : vector<8x128xf32>
    %cst_71 = arith.constant 1.000000e+00 : f32
    %196 = vector.broadcast %cst_71 : f32 to vector<8x128xf32>
    %197 = arith.addf %196, %195 : vector<8x128xf32>
    %198 = arith.divf %196, %197 : vector<8x128xf32>
    %199 = math.tanh %193 : vector<8x128xf32>
    %c64_i32_72 = arith.constant 64 : i32
    %200 = tpu.dynamic_rotate %199 by %c64_i32_72 dim 1 : vector<8x128xf32>, i32 -> vector<8x128xf32>
    %c32_i32_73 = arith.constant 32 : i32
    %201 = tpu.dynamic_rotate %198 by %c32_i32_73 dim 1 : vector<8x128xf32>, i32 -> vector<8x128xf32>
    %c96_i32_74 = arith.constant 96 : i32
    %202 = tpu.dynamic_rotate %198 by %c96_i32_74 dim 1 : vector<8x128xf32>, i32 -> vector<8x128xf32>
    %203 = arith.mulf %202, %167 : vector<8x128xf32>
    %204 = arith.mulf %198, %200 : vector<8x128xf32>
    %205 = arith.addf %203, %204 : vector<8x128xf32>
    %206 = math.tanh %205 : vector<8x128xf32>
    %207 = arith.mulf %201, %206 : vector<8x128xf32>
    %208 = arith.truncf %207 : vector<8x128xf32> to vector<8x128xbf16>
    %c48 = arith.constant 48 : index
    %c0_75 = arith.constant 0 : index
    %209 = vector.load %arg10[%c48, %c0_75] : memref<64x128xf32, #tpu.memory_space<vmem>>, vector<8x128xf32>
    %cst_76 = arith.constant dense<0.000000e+00> : vector<8x128xf32>
    %210 = tpu.matmul %188, %2, %cst_76 {dimension_numbers = #tpu.dot_dimension_numbers<[1], [0], [0], [1], [0, 0, 1, 1], [], []>} : vector<8x128xbf16>, vector<128x128xbf16>, vector<8x128xf32> -> vector<8x128xf32>
    %211 = arith.addf %209, %210 : vector<8x128xf32>
    %212 = arith.negf %211 : vector<8x128xf32>
    %213 = math.exp %212 : vector<8x128xf32>
    %cst_77 = arith.constant 1.000000e+00 : f32
    %214 = vector.broadcast %cst_77 : f32 to vector<8x128xf32>
    %215 = arith.addf %214, %213 : vector<8x128xf32>
    %216 = arith.divf %214, %215 : vector<8x128xf32>
    %217 = math.tanh %211 : vector<8x128xf32>
    %c64_i32_78 = arith.constant 64 : i32
    %218 = tpu.dynamic_rotate %217 by %c64_i32_78 dim 1 : vector<8x128xf32>, i32 -> vector<8x128xf32>
    %c32_i32_79 = arith.constant 32 : i32
    %219 = tpu.dynamic_rotate %216 by %c32_i32_79 dim 1 : vector<8x128xf32>, i32 -> vector<8x128xf32>
    %c96_i32_80 = arith.constant 96 : i32
    %220 = tpu.dynamic_rotate %216 by %c96_i32_80 dim 1 : vector<8x128xf32>, i32 -> vector<8x128xf32>
    %221 = arith.mulf %220, %185 : vector<8x128xf32>
    %222 = arith.mulf %216, %218 : vector<8x128xf32>
    %223 = arith.addf %221, %222 : vector<8x128xf32>
    %224 = math.tanh %223 : vector<8x128xf32>
    %225 = arith.mulf %219, %224 : vector<8x128xf32>
    %226 = arith.truncf %225 : vector<8x128xf32> to vector<8x128xbf16>
    %cst_81 = arith.constant dense<0.000000e+00> : vector<8x128xf32>
    %227 = tpu.matmul %188, %1, %cst_81 {dimension_numbers = #tpu.dot_dimension_numbers<[1], [0], [0], [1], [0, 0, 1, 1], [], []>} : vector<8x128xbf16>, vector<128x128xbf16>, vector<8x128xf32> -> vector<8x128xf32>
    %228 = vector.broadcast %5 : vector<1x128xf32> to vector<8x128xf32>
    %229 = arith.addf %228, %227 : vector<8x128xf32>
    %cst_82 = arith.constant dense<0.000000e+00> : vector<8x128xf32>
    %230 = tpu.matmul %208, %3, %cst_82 {dimension_numbers = #tpu.dot_dimension_numbers<[1], [0], [0], [1], [0, 0, 1, 1], [], []>} : vector<8x128xbf16>, vector<128x128xbf16>, vector<8x128xf32> -> vector<8x128xf32>
    %231 = arith.addf %229, %230 : vector<8x128xf32>
    %232 = arith.negf %231 : vector<8x128xf32>
    %233 = math.exp %232 : vector<8x128xf32>
    %cst_83 = arith.constant 1.000000e+00 : f32
    %234 = vector.broadcast %cst_83 : f32 to vector<8x128xf32>
    %235 = arith.addf %234, %233 : vector<8x128xf32>
    %236 = arith.divf %234, %235 : vector<8x128xf32>
    %237 = math.tanh %231 : vector<8x128xf32>
    %c64_i32_84 = arith.constant 64 : i32
    %238 = tpu.dynamic_rotate %237 by %c64_i32_84 dim 1 : vector<8x128xf32>, i32 -> vector<8x128xf32>
    %c32_i32_85 = arith.constant 32 : i32
    %239 = tpu.dynamic_rotate %236 by %c32_i32_85 dim 1 : vector<8x128xf32>, i32 -> vector<8x128xf32>
    %c96_i32_86 = arith.constant 96 : i32
    %240 = tpu.dynamic_rotate %236 by %c96_i32_86 dim 1 : vector<8x128xf32>, i32 -> vector<8x128xf32>
    %241 = arith.mulf %240, %205 : vector<8x128xf32>
    %242 = arith.mulf %236, %238 : vector<8x128xf32>
    %243 = arith.addf %241, %242 : vector<8x128xf32>
    %244 = math.tanh %243 : vector<8x128xf32>
    %245 = arith.mulf %239, %244 : vector<8x128xf32>
    %246 = arith.truncf %245 : vector<8x128xf32> to vector<8x128xbf16>
    %c56 = arith.constant 56 : index
    %c0_87 = arith.constant 0 : index
    %247 = vector.load %arg10[%c56, %c0_87] : memref<64x128xf32, #tpu.memory_space<vmem>>, vector<8x128xf32>
    %cst_88 = arith.constant dense<0.000000e+00> : vector<8x128xf32>
    %248 = tpu.matmul %226, %2, %cst_88 {dimension_numbers = #tpu.dot_dimension_numbers<[1], [0], [0], [1], [0, 0, 1, 1], [], []>} : vector<8x128xbf16>, vector<128x128xbf16>, vector<8x128xf32> -> vector<8x128xf32>
    %249 = arith.addf %247, %248 : vector<8x128xf32>
    %250 = arith.negf %249 : vector<8x128xf32>
    %251 = math.exp %250 : vector<8x128xf32>
    %cst_89 = arith.constant 1.000000e+00 : f32
    %252 = vector.broadcast %cst_89 : f32 to vector<8x128xf32>
    %253 = arith.addf %252, %251 : vector<8x128xf32>
    %254 = arith.divf %252, %253 : vector<8x128xf32>
    %255 = math.tanh %249 : vector<8x128xf32>
    %c64_i32_90 = arith.constant 64 : i32
    %256 = tpu.dynamic_rotate %255 by %c64_i32_90 dim 1 : vector<8x128xf32>, i32 -> vector<8x128xf32>
    %c32_i32_91 = arith.constant 32 : i32
    %257 = tpu.dynamic_rotate %254 by %c32_i32_91 dim 1 : vector<8x128xf32>, i32 -> vector<8x128xf32>
    %c96_i32_92 = arith.constant 96 : i32
    %258 = tpu.dynamic_rotate %254 by %c96_i32_92 dim 1 : vector<8x128xf32>, i32 -> vector<8x128xf32>
    %259 = arith.mulf %258, %223 : vector<8x128xf32>
    %260 = arith.mulf %254, %256 : vector<8x128xf32>
    %261 = arith.addf %259, %260 : vector<8x128xf32>
    %262 = math.tanh %261 : vector<8x128xf32>
    %263 = arith.mulf %257, %262 : vector<8x128xf32>
    %264 = arith.truncf %263 : vector<8x128xf32> to vector<8x128xbf16>
    %cst_93 = arith.constant dense<0.000000e+00> : vector<8x128xf32>
    %265 = tpu.matmul %226, %1, %cst_93 {dimension_numbers = #tpu.dot_dimension_numbers<[1], [0], [0], [1], [0, 0, 1, 1], [], []>} : vector<8x128xbf16>, vector<128x128xbf16>, vector<8x128xf32> -> vector<8x128xf32>
    %266 = vector.broadcast %5 : vector<1x128xf32> to vector<8x128xf32>
    %267 = arith.addf %266, %265 : vector<8x128xf32>
    %cst_94 = arith.constant dense<0.000000e+00> : vector<8x128xf32>
    %268 = tpu.matmul %246, %3, %cst_94 {dimension_numbers = #tpu.dot_dimension_numbers<[1], [0], [0], [1], [0, 0, 1, 1], [], []>} : vector<8x128xbf16>, vector<128x128xbf16>, vector<8x128xf32> -> vector<8x128xf32>
    %269 = arith.addf %267, %268 : vector<8x128xf32>
    %270 = arith.negf %269 : vector<8x128xf32>
    %271 = math.exp %270 : vector<8x128xf32>
    %cst_95 = arith.constant 1.000000e+00 : f32
    %272 = vector.broadcast %cst_95 : f32 to vector<8x128xf32>
    %273 = arith.addf %272, %271 : vector<8x128xf32>
    %274 = arith.divf %272, %273 : vector<8x128xf32>
    %275 = math.tanh %269 : vector<8x128xf32>
    %c64_i32_96 = arith.constant 64 : i32
    %276 = tpu.dynamic_rotate %275 by %c64_i32_96 dim 1 : vector<8x128xf32>, i32 -> vector<8x128xf32>
    %c32_i32_97 = arith.constant 32 : i32
    %277 = tpu.dynamic_rotate %274 by %c32_i32_97 dim 1 : vector<8x128xf32>, i32 -> vector<8x128xf32>
    %c96_i32_98 = arith.constant 96 : i32
    %278 = tpu.dynamic_rotate %274 by %c96_i32_98 dim 1 : vector<8x128xf32>, i32 -> vector<8x128xf32>
    %279 = arith.mulf %278, %243 : vector<8x128xf32>
    %280 = arith.mulf %274, %276 : vector<8x128xf32>
    %281 = arith.addf %279, %280 : vector<8x128xf32>
    %282 = math.tanh %281 : vector<8x128xf32>
    %283 = arith.mulf %277, %282 : vector<8x128xf32>
    %284 = arith.truncf %283 : vector<8x128xf32> to vector<8x128xbf16>
    %cst_99 = arith.constant dense<0.000000e+00> : vector<8x128xf32>
    %285 = tpu.matmul %264, %1, %cst_99 {dimension_numbers = #tpu.dot_dimension_numbers<[1], [0], [0], [1], [0, 0, 1, 1], [], []>} : vector<8x128xbf16>, vector<128x128xbf16>, vector<8x128xf32> -> vector<8x128xf32>
    %286 = vector.broadcast %5 : vector<1x128xf32> to vector<8x128xf32>
    %287 = arith.addf %286, %285 : vector<8x128xf32>
    %cst_100 = arith.constant dense<0.000000e+00> : vector<8x128xf32>
    %288 = tpu.matmul %284, %3, %cst_100 {dimension_numbers = #tpu.dot_dimension_numbers<[1], [0], [0], [1], [0, 0, 1, 1], [], []>} : vector<8x128xbf16>, vector<128x128xbf16>, vector<8x128xf32> -> vector<8x128xf32>
    %289 = arith.addf %287, %288 : vector<8x128xf32>
    %290 = arith.negf %289 : vector<8x128xf32>
    %291 = math.exp %290 : vector<8x128xf32>
    %cst_101 = arith.constant 1.000000e+00 : f32
    %292 = vector.broadcast %cst_101 : f32 to vector<8x128xf32>
    %293 = arith.addf %292, %291 : vector<8x128xf32>
    %294 = arith.divf %292, %293 : vector<8x128xf32>
    %295 = math.tanh %289 : vector<8x128xf32>
    %c64_i32_102 = arith.constant 64 : i32
    %296 = tpu.dynamic_rotate %295 by %c64_i32_102 dim 1 : vector<8x128xf32>, i32 -> vector<8x128xf32>
    %c32_i32_103 = arith.constant 32 : i32
    %297 = tpu.dynamic_rotate %294 by %c32_i32_103 dim 1 : vector<8x128xf32>, i32 -> vector<8x128xf32>
    %c96_i32_104 = arith.constant 96 : i32
    %298 = tpu.dynamic_rotate %294 by %c96_i32_104 dim 1 : vector<8x128xf32>, i32 -> vector<8x128xf32>
    %299 = arith.mulf %298, %281 : vector<8x128xf32>
    %300 = arith.mulf %294, %296 : vector<8x128xf32>
    %301 = arith.addf %299, %300 : vector<8x128xf32>
    %302 = math.tanh %301 : vector<8x128xf32>
    %303 = arith.mulf %297, %302 : vector<8x128xf32>
    %304 = arith.truncf %303 : vector<8x128xf32> to vector<8x128xbf16>
    %c0_105 = arith.constant 0 : index
    %c0_106 = arith.constant 0 : index
    %305 = vector.load %arg7[%c0_105, %c0_106] : memref<128x8xbf16, #tpu.memory_space<vmem>>, vector<128x8xbf16>
    %cst_107 = arith.constant dense<0.000000e+00> : vector<8x8xf32>
    %306 = tpu.matmul %304, %305, %cst_107 {dimension_numbers = #tpu.dot_dimension_numbers<[1], [0], [0], [1], [0, 0, 1, 1], [], []>} : vector<8x128xbf16>, vector<128x8xbf16>, vector<8x8xf32> -> vector<8x8xf32>
    %c0_108 = arith.constant 0 : index
    %c0_109 = arith.constant 0 : index
    %307 = vector.load %arg8[%c0_108, %c0_109] : memref<1x8xf32, #tpu.memory_space<vmem>>, vector<1x8xf32>
    %308 = vector.broadcast %307 : vector<1x8xf32> to vector<8x8xf32>
    %309 = arith.addf %306, %308 : vector<8x8xf32>
    %c0_110 = arith.constant 0 : index
    %c0_111 = arith.constant 0 : index
    %310 = vector.load %arg9[%c0_110, %c0_111] : memref<8x8xf32, #tpu.memory_space<vmem>>, vector<8x8xf32>
    tpu.vector_store %arg9[%c0_110, %c0_111], %309 {strides = array<i32>} : memref<8x8xf32, #tpu.memory_space<vmem>>, vector<8x8xf32>,
    return
  }
}

</mosaic_0001>

<llo_original>
// kernel: lstm_forward_pallas.1
$region0: #{lstm_forward_pallas.1}
  #allocation0 [shape = 'u32[]', space=smem, size = 0x4, offset = 0x4, fixed_abs, tag = 'smem constant byte address 0x4 - core index']
  #allocation1 [shape = 'u32[144,128]{1,0:T(1,128)}', space=vmem, size = 0x12000, scoped, tag = 'internal scratch']
  #allocation2 [shape = 'f32[64,128]{1,0:T(8,128)}', space=vmem, size = 0x8000, scoped, tag = 'scratch operand']
  %s0 = inlined_call_operand.vmem [shape: bf16[64,4], index: 0, kind: input, shape index: {}]
  %s1 = inlined_call_operand.vmem [shape: bf16[4,128], index: 1, kind: input, shape index: {}]
  %s2 = inlined_call_operand.vmem [shape: bf16[128,128], index: 2, kind: input, shape index: {}]
  %s3 = inlined_call_operand.vmem [shape: f32[1,128], index: 3, kind: input, shape index: {}]
  %s4 = inlined_call_operand.vmem [shape: bf16[128,128], index: 4, kind: input, shape index: {}]
  %s5 = inlined_call_operand.hbm [shape: bf16[128,128], index: 5, kind: input, shape index: {}]
  %s6 = inlined_call_operand.vmem [shape: f32[1,128], index: 6, kind: input, shape index: {}]
  %s7 = inlined_call_operand.vmem [shape: bf16[128,8], index: 7, kind: input, shape index: {}]
  %s8 = inlined_call_operand.vmem [shape: f32[1,8], index: 8, kind: input, shape index: {}]
  %s9 = inlined_call_operand.vmem [shape: f32[8,8], index: 9, kind: output, shape index: {}]
  %s10 = sld [smem:[#allocation0]]
  $region50: #{lstm_forward_pallas.1} parent=0
    _
  %s12 = ssub.s32 1, %s10
  %s13 = scalar_select 0, %s12, %s10
  $region1: #{lstm_forward_pallas.1} parent=0
    #allocation3 [shape = 'u8[32768]{0}', space=vmem, size = 0x8000, scoped, tag = 'input window, operand 5, single buffered']
    #allocation4 [shape = 's32[1]{0}', space=sflag, size = 0x4, scoped, tag = 'scoped memory for lstm_forward_pallas.1']
    %14 = vsyncpa [#allocation4], 0
    // Predicated region
    $region2: #{lstm_forward_pallas.1} parent=1 // pred_check
      _
    $region3: #{lstm_forward_pallas.1} parent=1 // pred_check_branch
      %16 = sbr.rel (0) target = $region5
    $region4: #{lstm_forward_pallas.1} parent=1 // pred_region
      _
    $region5: #{lstm_forward_pallas.1} parent=1 // pred_fallthru
      _
    // Predicated region
    $region6: #{lstm_forward_pallas.1} parent=1 // pred_check
      _
    $region7: #{lstm_forward_pallas.1} parent=1 // pred_check_branch
      %18 = sbr.rel (0) target = $region9
    $region8: #{lstm_forward_pallas.1} parent=1 // pred_region
      _
    $region9: #{lstm_forward_pallas.1} parent=1 // pred_fallthru
      _
    // Predicated region
    $region10: #{lstm_forward_pallas.1} parent=1 // pred_check
      _
    $region11: #{lstm_forward_pallas.1} parent=1 // pred_check_branch
      %20 = sbr.rel (0) target = $region13
    $region12: #{lstm_forward_pallas.1} parent=1 // pred_region
      _
    $region13: #{lstm_forward_pallas.1} parent=1 // pred_fallthru
      _
    // Predicated region
    $region14: #{lstm_forward_pallas.1} parent=1 // pred_check
      _
    $region15: #{lstm_forward_pallas.1} parent=1 // pred_check_branch
      %22 = sbr.rel (0) target = $region17
    $region16: #{lstm_forward_pallas.1} parent=1 // pred_region
      _
    $region17: #{lstm_forward_pallas.1} parent=1 // pred_fallthru
      _
    // Predicated region
    $region18: #{lstm_forward_pallas.1} parent=1 // pred_check
      _
    $region19: #{lstm_forward_pallas.1} parent=1 // pred_check_branch
      %24 = sbr.rel (0) target = $region21
    $region20: #{lstm_forward_pallas.1} parent=1 // pred_region
      _
    $region21: #{lstm_forward_pallas.1} parent=1 // pred_fallthru
      _
    // Predicated region
    $region22: #{lstm_forward_pallas.1} parent=1 // pred_check
      _
    $region23: #{lstm_forward_pallas.1} parent=1 // pred_check_branch
      %26 = sbr.rel (0) target = $region25
    $region24: #{lstm_forward_pallas.1} parent=1 // pred_region
      %s28 = ssub.s32 1024, 1024
      %29 = vsyncadd [#allocation4], %s28
      %s30 = sshll.u32 [#allocation3], 4
      %s31 = int_to_ptr.vmem [resolvable:$true] %s30
      %36 = dma.hbm_to_vmem [thread:$0]  %s5, 1024, %s31, [#allocation4], 64, 64, 4
    $region25: #{lstm_forward_pallas.1} parent=1 // pred_fallthru
      _
    // Predicated region
    $region26: #{lstm_forward_pallas.1} parent=1 // pred_check
      _
    $region27: #{lstm_forward_pallas.1} parent=1 // pred_check_branch
      %38 = sbr.rel (0) target = $region29
    $region28: #{lstm_forward_pallas.1} parent=1 // pred_region
      _
    $region29: #{lstm_forward_pallas.1} parent=1 // pred_fallthru
      _
    // Predicated region
    $region30: #{lstm_forward_pallas.1} parent=1 // pred_check
      _
    $region31: #{lstm_forward_pallas.1} parent=1 // pred_check_branch
      %40 = sbr.rel (0) target = $region33
    $region32: #{lstm_forward_pallas.1} parent=1 // pred_region
      _
    $region33: #{lstm_forward_pallas.1} parent=1 // pred_fallthru
      _
    // Predicated region
    $region34: #{lstm_forward_pallas.1} parent=1 // pred_check
      _
    $region35: #{lstm_forward_pallas.1} parent=1 // pred_check_branch
      %42 = sbr.rel (0) target = $region37
    $region36: #{lstm_forward_pallas.1} parent=1 // pred_region
      _
    $region37: #{lstm_forward_pallas.1} parent=1 // pred_fallthru
      _
    // Predicated region
    $region38: #{lstm_forward_pallas.1} parent=1 // pred_check
      _
    $region39: #{lstm_forward_pallas.1} parent=1 // pred_check_branch
      %44 = sbr.rel (0) target = $region41
    $region40: #{lstm_forward_pallas.1} parent=1 // pred_region
      %45 = dma.done [#allocation4], 1024
    $region41: #{lstm_forward_pallas.1} parent=1 // pred_fallthru
      _
    %v47 = vld [vmem:[%s1] sm:$0x3]
    %v48 = vld [vmem:[%s4] sm:$0xf]
    %v49 = vld [vmem:[%s4 + $0x4] sm:$0xf]
    %v50 = vld [vmem:[%s4 + $0x8] sm:$0xf]
    %v51 = vld [vmem:[%s4 + $0xc] sm:$0xf]
    %v52 = vld [vmem:[%s4 + $0x10] sm:$0xf]
    %v53 = vld [vmem:[%s4 + $0x14] sm:$0xf]
    %v54 = vld [vmem:[%s4 + $0x18] sm:$0xf]
    %v55 = vld [vmem:[%s4 + $0x1c] sm:$0xf]
    %v56 = vld [vmem:[%s4 + $0x20] sm:$0xf]
    %v57 = vld [vmem:[%s4 + $0x24] sm:$0xf]
    %v58 = vld [vmem:[%s4 + $0x28] sm:$0xf]
    %v59 = vld [vmem:[%s4 + $0x2c] sm:$0xf]
    %v60 = vld [vmem:[%s4 + $0x30] sm:$0xf]
    %v61 = vld [vmem:[%s4 + $0x34] sm:$0xf]
    %v62 = vld [vmem:[%s4 + $0x38] sm:$0xf]
    %v63 = vld [vmem:[%s4 + $0x3c] sm:$0xf]
    %v64 = vld [vmem:[%s2] sm:$0xf]
    %v65 = vld [vmem:[%s2 + $0x4] sm:$0xf]
    %v66 = vld [vmem:[%s2 + $0x8] sm:$0xf]
    %v67 = vld [vmem:[%s2 + $0xc] sm:$0xf]
    %v68 = vld [vmem:[%s2 + $0x10] sm:$0xf]
    %v69 = vld [vmem:[%s2 + $0x14] sm:$0xf]
    %v70 = vld [vmem:[%s2 + $0x18] sm:$0xf]
    %v71 = vld [vmem:[%s2 + $0x1c] sm:$0xf]
    %v72 = vld [vmem:[%s2 + $0x20] sm:$0xf]
    %v73 = vld [vmem:[%s2 + $0x24] sm:$0xf]
    %v74 = vld [vmem:[%s2 + $0x28] sm:$0xf]
    %v75 = vld [vmem:[%s2 + $0x2c] sm:$0xf]
    %v76 = vld [vmem:[%s2 + $0x30] sm:$0xf]
    %v77 = vld [vmem:[%s2 + $0x34] sm:$0xf]
    %v78 = vld [vmem:[%s2 + $0x38] sm:$0xf]
    %v79 = vld [vmem:[%s2 + $0x3c] sm:$0xf]
    %v80 = vld [vmem:[#allocation3] sm:$0xf]
    %v81 = vld [vmem:[#allocation3 + $0x4] sm:$0xf]
    %v82 = vld [vmem:[#allocation3 + $0x8] sm:$0xf]
    %v83 = vld [vmem:[#allocation3 + $0xc] sm:$0xf]
    %v84 = vld [vmem:[#allocation3 + $0x10] sm:$0xf]
    %v85 = vld [vmem:[#allocation3 + $0x14] sm:$0xf]
    %v86 = vld [vmem:[#allocation3 + $0x18] sm:$0xf]
    %v87 = vld [vmem:[#allocation3 + $0x1c] sm:$0xf]
    %v88 = vld [vmem:[#allocation3 + $0x20] sm:$0xf]
    %v89 = vld [vmem:[#allocation3 + $0x24] sm:$0xf]
    %v90 = vld [vmem:[#allocation3 + $0x28] sm:$0xf]
    %v91 = vld [vmem:[#allocation3 + $0x2c] sm:$0xf]
    %v92 = vld [vmem:[#allocation3 + $0x30] sm:$0xf]
    %v93 = vld [vmem:[#allocation3 + $0x34] sm:$0xf]
    %v94 = vld [vmem:[#allocation3 + $0x38] sm:$0xf]
    %v95 = vld [vmem:[#allocation3 + $0x3c] sm:$0xf]
    %v96 = vld [vmem:[%s3] sm:$0x1]
    %v97 = vld [vmem:[%s6] sm:$0x1]
    %v98 = vld [vmem:[%s0] sm:$0xf]
    %v99 = vld [vmem:[%s0 + $0x4] sm:$0xf]
    %v100 = vld [vmem:[%s0 + $0x8] sm:$0xf]
    %v101 = vld [vmem:[%s0 + $0xc] sm:$0xf]
    %v102 = vld [vmem:[%s0 + $0x10] sm:$0xf]
    %v103 = vld [vmem:[%s0 + $0x14] sm:$0xf]
    %v104 = vld [vmem:[%s0 + $0x18] sm:$0xf]
    %v105 = vld [vmem:[%s0 + $0x1c] sm:$0xf]
    %v107 = vlaneseq
    %v108 = vshrl.u32 %v107, 7
    %v109 = vsub.s32 0, %v108
    %v110 = vrot.slane %v96, %v109
    %v120 = vunpack.c.l.b16 %v98
    %v121 = vunpack.c.l.b16 %v99
    %v122 = vunpack.c.l.b16 %v100
    %v123 = vunpack.c.l.b16 %v101
    %v124 = vunpack.c.l.b16 %v102
    %v125 = vunpack.c.l.b16 %v103
    %v126 = vunpack.c.l.b16 %v104
    %v127 = vunpack.c.l.b16 %v105
    %v128 = vpack.c.b16 %v121, %v120
    %v129 = vpack.c.b16 %v123, %v122
    %v130 = vpack.c.b16 %v125, %v124
    %v131 = vpack.c.b16 %v127, %v126
    %vm132 = vcmask 31744
    %v134 = vsel %vm132, %v128, 0
    %v137 = vsel %vm132, %v129, 0
    %v140 = vsel %vm132, %v130, 0
    %v143 = vsel %vm132, %v131, 0
    %vm145 = vcmask 1041408
    %v147 = vsel %vm145, %v47, 0
    %149 = vmatprep.subr.bf16.mxu0 0
    %150 = vmatpush1.bf16.msra.mxu0 0
    %151 = vmatprep.subr.bf16.mxu0 0
    %152 = vmatpush1.bf16.msra.mxu0 0
    %153 = vmatprep.subr.bf16.mxu0 0
    %154 = vmatpush1.bf16.msra.mxu0 0
    %155 = vmatprep.subr.bf16.mxu0 0
    %156 = vmatpush1.bf16.msra.mxu0 0
    %157 = vmatprep.subr.bf16.mxu0 0
    %158 = vmatpush1.bf16.msra.mxu0 0
    %159 = vmatprep.subr.bf16.mxu0 0
    %160 = vmatpush1.bf16.msra.mxu0 0
    %161 = vmatprep.subr.bf16.mxu0 0
    %162 = vmatpush1.bf16.msra.mxu0 0
    %163 = vmatprep.subr.bf16.mxu0 0
    %164 = vmatpush1.bf16.msra.mxu0 %v147
    %165 = vmatprep.subr.bf16.mxu0 0
    %166 = vmatpush2.bf16.msra.mxu0 0
    %167 = vmatprep.subr.bf16.mxu0 0
    %168 = vmatpush2.bf16.msra.mxu0 0
    %169 = vmatprep.subr.bf16.mxu0 0
    %170 = vmatpush2.bf16.msra.mxu0 0
    %171 = vmatprep.subr.bf16.mxu0 0
    %172 = vmatpush2.bf16.msra.mxu0 0
    %173 = vmatprep.subr.bf16.mxu0 0
    %174 = vmatpush2.bf16.msra.mxu0 0
    %175 = vmatprep.subr.bf16.mxu0 0
    %176 = vmatpush2.bf16.msra.mxu0 0
    %177 = vmatprep.subr.bf16.mxu0 0
    %178 = vmatpush2.bf16.msra.mxu0 0
    %179 = vmatprep.subr.bf16.mxu0 0
    %180 = vmatpush2.bf16.msra.mxu0 0
    %181 = vmatprep.mubr.bf16.mxu0 0
    %182 = vmatmul.mubr.bf16.gmra.mxu0 %v134
    %v183 = vpop.f32.mrf.mxu0
    %v184 = vadd.f32 %v110, %v183
    %v185 = vpop.f32.mrf.mxu0
    %v186 = vpop.f32.mrf.mxu0
    %v187 = vadd.f32 %v110, %v186
    %v188 = vpop.f32.mrf.mxu0
    %189 = vmatprep.mubr.bf16.mxu0 0
    %190 = vmatmul.mubr.bf16.gmra.mxu0 %v137
    %v191 = vpop.f32.mrf.mxu0
    %v192 = vadd.f32 %v110, %v191
    %v193 = vpop.f32.mrf.mxu0
    %v194 = vpop.f32.mrf.mxu0
    %v195 = vadd.f32 %v110, %v194
    %v196 = vpop.f32.mrf.mxu0
    %197 = vmatprep.mubr.bf16.mxu0 0
    %198 = vmatmul.mubr.bf16.gmra.mxu0 %v140
    %v199 = vpop.f32.mrf.mxu0
    %v200 = vadd.f32 %v110, %v199
    %v201 = vpop.f32.mrf.mxu0
    %v202 = vpop.f32.mrf.mxu0
    %v203 = vadd.f32 %v110, %v202
    %v204 = vpop.f32.mrf.mxu0
    %205 = vmatprep.mubr.bf16.mxu0 0
    %206 = vmatmul.mubr.bf16.gmra.mxu0 %v143
    %v207 = vpop.f32.mrf.mxu0
    %v208 = vadd.f32 %v110, %v207
    %v209 = vpop.f32.mrf.mxu0
    %v210 = vpop.f32.mrf.mxu0
    %v211 = vadd.f32 %v110, %v210
    %v212 = vpop.f32.mrf.mxu0
    %213 = vdwg.mxu0
    %214 = vst [vmem:[#allocation2] sm:$0xff] %v184
    %215 = vst [vmem:[#allocation2 + $0x8] sm:$0xff] %v187
    %216 = vst [vmem:[#allocation2 + $0x10] sm:$0xff] %v192
    %217 = vst [vmem:[#allocation2 + $0x18] sm:$0xff] %v195
    %218 = vst [vmem:[#allocation2 + $0x20] sm:$0xff] %v200
    %219 = vst [vmem:[#allocation2 + $0x28] sm:$0xff] %v203
    %220 = vst [vmem:[#allocation2 + $0x30] sm:$0xff] %v208
    %221 = vst [vmem:[#allocation2 + $0x38] sm:$0xff] %v211
    %v222 = vld [vmem:[#allocation2] sm:$0xff]
    %v223 = vxor.u32 %v222, 2147483648
    %v224 = vmul.f32 %v223, 1.442695
    %v225 = vpow.pop %v224
    %v226 = vadd.f32 %v225, 1.0
    %v227 = vrcp.pop %v226
    %v228 = vmul.f32 1.0, %v227
    %v229 = vtanh.pop %v222
    %230 = vrot.lane.b32.xlu0 %v229, 64
    %v231 = vpop.permute.xlu0 %230
    %232 = vrot.lane.b32.xlu0 %v228, 32
    %v233 = vpop.permute.xlu0 %232
    %v234 = vmul.f32 %v228, %v231
    %v235 = vtanh.pop %v234
    %v236 = vmul.f32 %v233, %v235
    %v237 = vpack.c.bf16 %v236, %v236
    %v238 = vld [vmem:[#allocation2 + $0x8] sm:$0xff]
    %v255 = vunpack.c.l.b16 %v64
    %v256 = vunpack.c.l.b16 %v65
    %v257 = vunpack.c.l.b16 %v66
    %v258 = vunpack.c.l.b16 %v67
    %v259 = vunpack.c.l.b16 %v68
    %v260 = vunpack.c.l.b16 %v69
    %v261 = vunpack.c.l.b16 %v70
    %v262 = vunpack.c.l.b16 %v71
    %v263 = vunpack.c.l.b16 %v72
    %v264 = vunpack.c.l.b16 %v73
    %v265 = vunpack.c.l.b16 %v74
    %v266 = vunpack.c.l.b16 %v75
    %v267 = vunpack.c.l.b16 %v76
    %v268 = vunpack.c.l.b16 %v77
    %v269 = vunpack.c.l.b16 %v78
    %v270 = vunpack.c.l.b16 %v79
    %v271 = vpack.c.b16 %v256, %v255
    %v272 = vpack.c.b16 %v258, %v257
    %v273 = vpack.c.b16 %v260, %v259
    %v274 = vpack.c.b16 %v262, %v261
    %v275 = vpack.c.b16 %v264, %v263
    %v276 = vpack.c.b16 %v266, %v265
    %v277 = vpack.c.b16 %v268, %v267
    %v278 = vpack.c.b16 %v270, %v269
    %287 = vmatprep.subr.bf16.mxu0 0
    %288 = vmatpush1.bf16.msra.mxu0 %v278
    %289 = vmatprep.subr.bf16.mxu0 0
    %290 = vmatpush1.bf16.msra.mxu0 %v277
    %291 = vmatprep.subr.bf16.mxu0 0
    %292 = vmatpush1.bf16.msra.mxu0 %v276
    %293 = vmatprep.subr.bf16.mxu0 0
    %294 = vmatpush1.bf16.msra.mxu0 %v275
    %295 = vmatprep.subr.bf16.mxu0 0
    %296 = vmatpush1.bf16.msra.mxu0 %v274
    %297 = vmatprep.subr.bf16.mxu0 0
    %298 = vmatpush1.bf16.msra.mxu0 %v273
    %299 = vmatprep.subr.bf16.mxu0 0
    %300 = vmatpush1.bf16.msra.mxu0 %v272
    %301 = vmatprep.subr.bf16.mxu0 0
    %302 = vmatpush1.bf16.msra.mxu0 %v271
    %303 = vmatprep.subr.bf16.mxu0 0
    %304 = vmatpush2.bf16.msra.mxu0 0
    %305 = vmatprep.subr.bf16.mxu0 0
    %306 = vmatpush2.bf16.msra.mxu0 0
    %307 = vmatprep.subr.bf16.mxu0 0
    %308 = vmatpush2.bf16.msra.mxu0 0
    %309 = vmatprep.subr.bf16.mxu0 0
    %310 = vmatpush2.bf16.msra.mxu0 0
    %311 = vmatprep.subr.bf16.mxu0 0
    %312 = vmatpush2.bf16.msra.mxu0 0
    %313 = vmatprep.subr.bf16.mxu0 0
    %314 = vmatpush2.bf16.msra.mxu0 0
    %315 = vmatprep.subr.bf16.mxu0 0
    %316 = vmatpush2.bf16.msra.mxu0 0
    %317 = vmatprep.subr.bf16.mxu0 0
    %318 = vmatpush2.bf16.msra.mxu0 0
    %319 = vmatprep.mubr.bf16.mxu0 0
    %320 = vmatmul.mubr.bf16.gmra.mxu0 %v237
    %v321 = vpop.f32.mrf.mxu0
    %v322 = vadd.f32 0.0, %v321
    %v323 = vpop.f32.mrf.mxu0
    %v324 = vpop.f32.mrf.mxu0
    %v325 = vpop.f32.mrf.mxu0
    %326 = vdwg.mxu0
    %v327 = vadd.f32 %v238, %v322
    %v328 = vxor.u32 %v327, 2147483648
    %v329 = vmul.f32 %v328, 1.442695
    %v330 = vpow.pop %v329
    %v331 = vadd.f32 %v330, 1.0
    %v332 = vrcp.pop %v331
    %v333 = vmul.f32 1.0, %v332
    %v334 = vtanh.pop %v327
    %335 = vrot.lane.b32.xlu0 %v334, 64
    %v336 = vpop.permute.xlu0 %335
    %337 = vrot.lane.b32.xlu0 %v333, 32
    %v338 = vpop.permute.xlu0 %337
    %339 = vrot.lane.b32.xlu0 %v333, 96
    %v340 = vpop.permute.xlu0 %339
    %v341 = vmul.f32 %v340, %v234
    %v342 = vmul.f32 %v333, %v336
    %v343 = vadd.f32 %v341, %v342
    %v344 = vtanh.pop %v343
    %v345 = vmul.f32 %v338, %v344
    %v346 = vpack.c.bf16 %v345, %v345
    %v363 = vunpack.c.l.b16 %v48
    %v364 = vunpack.c.l.b16 %v49
    %v365 = vunpack.c.l.b16 %v50
    %v366 = vunpack.c.l.b16 %v51
    %v367 = vunpack.c.l.b16 %v52
    %v368 = vunpack.c.l.b16 %v53
    %v369 = vunpack.c.l.b16 %v54
    %v370 = vunpack.c.l.b16 %v55
    %v371 = vunpack.c.l.b16 %v56
    %v372 = vunpack.c.l.b16 %v57
    %v373 = vunpack.c.l.b16 %v58
    %v374 = vunpack.c.l.b16 %v59
    %v375 = vunpack.c.l.b16 %v60
    %v376 = vunpack.c.l.b16 %v61
    %v377 = vunpack.c.l.b16 %v62
    %v378 = vunpack.c.l.b16 %v63
    %v379 = vpack.c.b16 %v364, %v363
    %v380 = vpack.c.b16 %v366, %v365
    %v381 = vpack.c.b16 %v368, %v367
    %v382 = vpack.c.b16 %v370, %v369
    %v383 = vpack.c.b16 %v372, %v371
    %v384 = vpack.c.b16 %v374, %v373
    %v385 = vpack.c.b16 %v376, %v375
    %v386 = vpack.c.b16 %v378, %v377
    %395 = vmatprep.subr.bf16.mxu0 0
    %396 = vmatpush1.bf16.msra.mxu0 %v386
    %397 = vmatprep.subr.bf16.mxu0 0
    %398 = vmatpush1.bf16.msra.mxu0 %v385
    %399 = vmatprep.subr.bf16.mxu0 0
    %400 = vmatpush1.bf16.msra.mxu0 %v384
    %401 = vmatprep.subr.bf16.mxu0 0
    %402 = vmatpush1.bf16.msra.mxu0 %v383
    %403 = vmatprep.subr.bf16.mxu0 0
    %404 = vmatpush1.bf16.msra.mxu0 %v382
    %405 = vmatprep.subr.bf16.mxu0 0
    %406 = vmatpush1.bf16.msra.mxu0 %v381
    %407 = vmatprep.subr.bf16.mxu0 0
    %408 = vmatpush1.bf16.msra.mxu0 %v380
    %409 = vmatprep.subr.bf16.mxu0 0
    %410 = vmatpush1.bf16.msra.mxu0 %v379
    %411 = vmatprep.subr.bf16.mxu0 0
    %412 = vmatpush2.bf16.msra.mxu0 0
    %413 = vmatprep.subr.bf16.mxu0 0
    %414 = vmatpush2.bf16.msra.mxu0 0
    %415 = vmatprep.subr.bf16.mxu0 0
    %416 = vmatpush2.bf16.msra.mxu0 0
    %417 = vmatprep.subr.bf16.mxu0 0
    %418 = vmatpush2.bf16.msra.mxu0 0
    %419 = vmatprep.subr.bf16.mxu0 0
    %420 = vmatpush2.bf16.msra.mxu0 0
    %421 = vmatprep.subr.bf16.mxu0 0
    %422 = vmatpush2.bf16.msra.mxu0 0
    %423 = vmatprep.subr.bf16.mxu0 0
    %424 = vmatpush2.bf16.msra.mxu0 0
    %425 = vmatprep.subr.bf16.mxu0 0
    %426 = vmatpush2.bf16.msra.mxu0 0
    %427 = vmatprep.mubr.bf16.mxu0 0
    %428 = vmatmul.mubr.bf16.gmra.mxu0 %v237
    %v429 = vpop.f32.mrf.mxu0
    %v430 = vadd.f32 0.0, %v429
    %v431 = vpop.f32.mrf.mxu0
    %v432 = vpop.f32.mrf.mxu0
    %v433 = vpop.f32.mrf.mxu0
    %434 = vdwg.mxu0
    %v436 = vlaneseq
    %v437 = vshrl.u32 %v436, 7
    %v438 = vsub.s32 0, %v437
    %v439 = vrot.slane %v97, %v438
    %v441 = vadd.f32 %v439, %v430
    %v442 = vxor.u32 %v441, 2147483648
    %v443 = vmul.f32 %v442, 1.442695
    %v444 = vpow.pop %v443
    %v445 = vadd.f32 %v444, 1.0
    %v446 = vrcp.pop %v445
    %v447 = vmul.f32 1.0, %v446
    %v448 = vtanh.pop %v441
    %449 = vrot.lane.b32.xlu0 %v448, 64
    %v450 = vpop.permute.xlu0 %449
    %451 = vrot.lane.b32.xlu0 %v447, 32
    %v452 = vpop.permute.xlu0 %451
    %v453 = vmul.f32 %v447, %v450
    %v454 = vtanh.pop %v453
    %v455 = vmul.f32 %v452, %v454
    %v456 = vpack.c.bf16 %v455, %v455
    %v457 = vld [vmem:[#allocation2 + $0x10] sm:$0xff]
    %458 = vmatprep.subr.bf16.mxu0 0
    %459 = vmatpush1.bf16.msra.mxu0 %v278
    %460 = vmatprep.subr.bf16.mxu0 0
    %461 = vmatpush1.bf16.msra.mxu0 %v277
    %462 = vmatprep.subr.bf16.mxu0 0
    %463 = vmatpush1.bf16.msra.mxu0 %v276
    %464 = vmatprep.subr.bf16.mxu0 0
    %465 = vmatpush1.bf16.msra.mxu0 %v275
    %466 = vmatprep.subr.bf16.mxu0 0
    %467 = vmatpush1.bf16.msra.mxu0 %v274
    %468 = vmatprep.subr.bf16.mxu0 0
    %469 = vmatpush1.bf16.msra.mxu0 %v273
    %470 = vmatprep.subr.bf16.mxu0 0
    %471 = vmatpush1.bf16.msra.mxu0 %v272
    %472 = vmatprep.subr.bf16.mxu0 0
    %473 = vmatpush1.bf16.msra.mxu0 %v271
    %474 = vmatprep.subr.bf16.mxu0 0
    %475 = vmatpush2.bf16.msra.mxu0 0
    %476 = vmatprep.subr.bf16.mxu0 0
    %477 = vmatpush2.bf16.msra.mxu0 0
    %478 = vmatprep.subr.bf16.mxu0 0
    %479 = vmatpush2.bf16.msra.mxu0 0
    %480 = vmatprep.subr.bf16.mxu0 0
    %481 = vmatpush2.bf16.msra.mxu0 0
    %482 = vmatprep.subr.bf16.mxu0 0
    %483 = vmatpush2.bf16.msra.mxu0 0
    %484 = vmatprep.subr.bf16.mxu0 0
    %485 = vmatpush2.bf16.msra.mxu0 0
    %486 = vmatprep.subr.bf16.mxu0 0
    %487 = vmatpush2.bf16.msra.mxu0 0
    %488 = vmatprep.subr.bf16.mxu0 0
    %489 = vmatpush2.bf16.msra.mxu0 0
    %490 = vmatprep.mubr.bf16.mxu0 0
    %491 = vmatmul.mubr.bf16.gmra.mxu0 %v346
    %v492 = vpop.f32.mrf.mxu0
    %v493 = vadd.f32 0.0, %v492
    %v494 = vpop.f32.mrf.mxu0
    %v495 = vpop.f32.mrf.mxu0
    %v496 = vpop.f32.mrf.mxu0
    %497 = vdwg.mxu0
    %v498 = vadd.f32 %v457, %v493
    %v499 = vxor.u32 %v498, 2147483648
    %v500 = vmul.f32 %v499, 1.442695
    %v501 = vpow.pop %v500
    %v502 = vadd.f32 %v501, 1.0
    %v503 = vrcp.pop %v502
    %v504 = vmul.f32 1.0, %v503
    %v505 = vtanh.pop %v498
    %506 = vrot.lane.b32.xlu0 %v505, 64
    %v507 = vpop.permute.xlu0 %506
    %508 = vrot.lane.b32.xlu0 %v504, 32
    %v509 = vpop.permute.xlu0 %508
    %510 = vrot.lane.b32.xlu0 %v504, 96
    %v511 = vpop.permute.xlu0 %510
    %v512 = vmul.f32 %v511, %v343
    %v513 = vmul.f32 %v504, %v507
    %v514 = vadd.f32 %v512, %v513
    %v515 = vtanh.pop %v514
    %v516 = vmul.f32 %v509, %v515
    %v517 = vpack.c.bf16 %v516, %v516
    %518 = vmatprep.subr.bf16.mxu0 0
    %519 = vmatpush1.bf16.msra.mxu0 %v386
    %520 = vmatprep.subr.bf16.mxu0 0
    %521 = vmatpush1.bf16.msra.mxu0 %v385
    %522 = vmatprep.subr.bf16.mxu0 0
    %523 = vmatpush1.bf16.msra.mxu0 %v384
    %524 = vmatprep.subr.bf16.mxu0 0
    %525 = vmatpush1.bf16.msra.mxu0 %v383
    %526 = vmatprep.subr.bf16.mxu0 0
    %527 = vmatpush1.bf16.msra.mxu0 %v382
    %528 = vmatprep.subr.bf16.mxu0 0
    %529 = vmatpush1.bf16.msra.mxu0 %v381
    %530 = vmatprep.subr.bf16.mxu0 0
    %531 = vmatpush1.bf16.msra.mxu0 %v380
    %532 = vmatprep.subr.bf16.mxu0 0
    %533 = vmatpush1.bf16.msra.mxu0 %v379
    %534 = vmatprep.subr.bf16.mxu0 0
    %535 = vmatpush2.bf16.msra.mxu0 0
    %536 = vmatprep.subr.bf16.mxu0 0
    %537 = vmatpush2.bf16.msra.mxu0 0
    %538 = vmatprep.subr.bf16.mxu0 0
    %539 = vmatpush2.bf16.msra.mxu0 0
    %540 = vmatprep.subr.bf16.mxu0 0
    %541 = vmatpush2.bf16.msra.mxu0 0
    %542 = vmatprep.subr.bf16.mxu0 0
    %543 = vmatpush2.bf16.msra.mxu0 0
    %544 = vmatprep.subr.bf16.mxu0 0
    %545 = vmatpush2.bf16.msra.mxu0 0
    %546 = vmatprep.subr.bf16.mxu0 0
    %547 = vmatpush2.bf16.msra.mxu0 0
    %548 = vmatprep.subr.bf16.mxu0 0
    %549 = vmatpush2.bf16.msra.mxu0 0
    %550 = vmatprep.mubr.bf16.mxu0 0
    %551 = vmatmul.mubr.bf16.gmra.mxu0 %v346
    %v552 = vpop.f32.mrf.mxu0
    %v553 = vadd.f32 0.0, %v552
    %v554 = vpop.f32.mrf.mxu0
    %v555 = vpop.f32.mrf.mxu0
    %v556 = vpop.f32.mrf.mxu0
    %557 = vdwg.mxu0
    %v558 = vadd.f32 %v439, %v553
    %v575 = vunpack.c.l.b16 %v80
    %v576 = vunpack.c.l.b16 %v81
    %v577 = vunpack.c.l.b16 %v82
    %v578 = vunpack.c.l.b16 %v83
    %v579 = vunpack.c.l.b16 %v84
    %v580 = vunpack.c.l.b16 %v85
    %v581 = vunpack.c.l.b16 %v86
    %v582 = vunpack.c.l.b16 %v87
    %v583 = vunpack.c.l.b16 %v88
    %v584 = vunpack.c.l.b16 %v89
    %v585 = vunpack.c.l.b16 %v90
    %v586 = vunpack.c.l.b16 %v91
    %v587 = vunpack.c.l.b16 %v92
    %v588 = vunpack.c.l.b16 %v93
    %v589 = vunpack.c.l.b16 %v94
    %v590 = vunpack.c.l.b16 %v95
    %v591 = vpack.c.b16 %v576, %v575
    %v592 = vpack.c.b16 %v578, %v577
    %v593 = vpack.c.b16 %v580, %v579
    %v594 = vpack.c.b16 %v582, %v581
    %v595 = vpack.c.b16 %v584, %v583
    %v596 = vpack.c.b16 %v586, %v585
    %v597 = vpack.c.b16 %v588, %v587
    %v598 = vpack.c.b16 %v590, %v589
    %607 = vmatprep.subr.bf16.mxu0 0
    %608 = vmatpush1.bf16.msra.mxu0 %v598
    %609 = vmatprep.subr.bf16.mxu0 0
    %610 = vmatpush1.bf16.msra.mxu0 %v597
    %611 = vmatprep.subr.bf16.mxu0 0
    %612 = vmatpush1.bf16.msra.mxu0 %v596
    %613 = vmatprep.subr.bf16.mxu0 0
    %614 = vmatpush1.bf16.msra.mxu0 %v595
    %615 = vmatprep.subr.bf16.mxu0 0
    %616 = vmatpush1.bf16.msra.mxu0 %v594
    %617 = vmatprep.subr.bf16.mxu0 0
    %618 = vmatpush1.bf16.msra.mxu0 %v593
    %619 = vmatprep.subr.bf16.mxu0 0
    %620 = vmatpush1.bf16.msra.mxu0 %v592
    %621 = vmatprep.subr.bf16.mxu0 0
    %622 = vmatpush1.bf16.msra.mxu0 %v591
    %623 = vmatprep.subr.bf16.mxu0 0
    %624 = vmatpush2.bf16.msra.mxu0 0
    %625 = vmatprep.subr.bf16.mxu0 0
    %626 = vmatpush2.bf16.msra.mxu0 0
    %627 = vmatprep.subr.bf16.mxu0 0
    %628 = vmatpush2.bf16.msra.mxu0 0
    %629 = vmatprep.subr.bf16.mxu0 0
    %630 = vmatpush2.bf16.msra.mxu0 0
    %631 = vmatprep.subr.bf16.mxu0 0
    %632 = vmatpush2.bf16.msra.mxu0 0
    %633 = vmatprep.subr.bf16.mxu0 0
    %634 = vmatpush2.bf16.msra.mxu0 0
    %635 = vmatprep.subr.bf16.mxu0 0
    %636 = vmatpush2.bf16.msra.mxu0 0
    %637 = vmatprep.subr.bf16.mxu0 0
    %638 = vmatpush2.bf16.msra.mxu0 0
    %639 = vmatprep.mubr.bf16.mxu0 0
    %640 = vmatmul.mubr.bf16.gmra.mxu0 %v456
    %v641 = vpop.f32.mrf.mxu0
    %v642 = vadd.f32 0.0, %v641
    %v643 = vpop.f32.mrf.mxu0
    %v644 = vpop.f32.mrf.mxu0
    %v645 = vpop.f32.mrf.mxu0
    %646 = vdwg.mxu0
    %v647 = vadd.f32 %v558, %v642
    %v648 = vxor.u32 %v647, 2147483648
    %v649 = vmul.f32 %v648, 1.442695
    %v650 = vpow.pop %v649
    %v651 = vadd.f32 %v650, 1.0
    %v652 = vrcp.pop %v651
    %v653 = vmul.f32 1.0, %v652
    %v654 = vtanh.pop %v647
    %655 = vrot.lane.b32.xlu0 %v654, 64
    %v656 = vpop.permute.xlu0 %655
    %657 = vrot.lane.b32.xlu0 %v653, 32
    %v658 = vpop.permute.xlu0 %657
    %659 = vrot.lane.b32.xlu0 %v653, 96
    %v660 = vpop.permute.xlu0 %659
    %v661 = vmul.f32 %v660, %v453
    %v662 = vmul.f32 %v653, %v656
    %v663 = vadd.f32 %v661, %v662
    %v664 = vtanh.pop %v663
    %v665 = vmul.f32 %v658, %v664
    %v666 = vpack.c.bf16 %v665, %v665
    %v667 = vld [vmem:[#allocation2 + $0x18] sm:$0xff]
    %668 = vmatprep.subr.bf16.mxu0 0
    %669 = vmatpush1.bf16.msra.mxu0 %v278
    %670 = vmatprep.subr.bf16.mxu0 0
    %671 = vmatpush1.bf16.msra.mxu0 %v277
    %672 = vmatprep.subr.bf16.mxu0 0
    %673 = vmatpush1.bf16.msra.mxu0 %v276
    %674 = vmatprep.subr.bf16.mxu0 0
    %675 = vmatpush1.bf16.msra.mxu0 %v275
    %676 = vmatprep.subr.bf16.mxu0 0
    %677 = vmatpush1.bf16.msra.mxu0 %v274
    %678 = vmatprep.subr.bf16.mxu0 0
    %679 = vmatpush1.bf16.msra.mxu0 %v273
    %680 = vmatprep.subr.bf16.mxu0 0
    %681 = vmatpush1.bf16.msra.mxu0 %v272
    %682 = vmatprep.subr.bf16.mxu0 0
    %683 = vmatpush1.bf16.msra.mxu0 %v271
    %684 = vmatprep.subr.bf16.mxu0 0
    %685 = vmatpush2.bf16.msra.mxu0 0
    %686 = vmatprep.subr.bf16.mxu0 0
    %687 = vmatpush2.bf16.msra.mxu0 0
    %688 = vmatprep.subr.bf16.mxu0 0
    %689 = vmatpush2.bf16.msra.mxu0 0
    %690 = vmatprep.subr.bf16.mxu0 0
    %691 = vmatpush2.bf16.msra.mxu0 0
    %692 = vmatprep.subr.bf16.mxu0 0
    %693 = vmatpush2.bf16.msra.mxu0 0
    %694 = vmatprep.subr.bf16.mxu0 0
    %695 = vmatpush2.bf16.msra.mxu0 0
    %696 = vmatprep.subr.bf16.mxu0 0
    %697 = vmatpush2.bf16.msra.mxu0 0
    %698 = vmatprep.subr.bf16.mxu0 0
    %699 = vmatpush2.bf16.msra.mxu0 0
    %700 = vmatprep.mubr.bf16.mxu0 0
    %701 = vmatmul.mubr.bf16.gmra.mxu0 %v517
    %v702 = vpop.f32.mrf.mxu0
    %v703 = vadd.f32 0.0, %v702
    %v704 = vpop.f32.mrf.mxu0
    %v705 = vpop.f32.mrf.mxu0
    %v706 = vpop.f32.mrf.mxu0
    %707 = vdwg.mxu0
    %v708 = vadd.f32 %v667, %v703
    %v709 = vxor.u32 %v708, 2147483648
    %v710 = vmul.f32 %v709, 1.442695
    %v711 = vpow.pop %v710
    %v712 = vadd.f32 %v711, 1.0
    %v713 = vrcp.pop %v712
    %v714 = vmul.f32 1.0, %v713
    %v715 = vtanh.pop %v708
    %716 = vrot.lane.b32.xlu0 %v715, 64
    %v717 = vpop.permute.xlu0 %716
    %718 = vrot.lane.b32.xlu0 %v714, 32
    %v719 = vpop.permute.xlu0 %718
    %720 = vrot.lane.b32.xlu0 %v714, 96
    %v721 = vpop.permute.xlu0 %720
    %v722 = vmul.f32 %v721, %v514
    %v723 = vmul.f32 %v714, %v717
    %v724 = vadd.f32 %v722, %v723
    %v725 = vtanh.pop %v724
    %v726 = vmul.f32 %v719, %v725
    %v727 = vpack.c.bf16 %v726, %v726
    %728 = vmatprep.subr.bf16.mxu0 0
    %729 = vmatpush1.bf16.msra.mxu0 %v386
    %730 = vmatprep.subr.bf16.mxu0 0
    %731 = vmatpush1.bf16.msra.mxu0 %v385
    %732 = vmatprep.subr.bf16.mxu0 0
    %733 = vmatpush1.bf16.msra.mxu0 %v384
    %734 = vmatprep.subr.bf16.mxu0 0
    %735 = vmatpush1.bf16.msra.mxu0 %v383
    %736 = vmatprep.subr.bf16.mxu0 0
    %737 = vmatpush1.bf16.msra.mxu0 %v382
    %738 = vmatprep.subr.bf16.mxu0 0
    %739 = vmatpush1.bf16.msra.mxu0 %v381
    %740 = vmatprep.subr.bf16.mxu0 0
    %741 = vmatpush1.bf16.msra.mxu0 %v380
    %742 = vmatprep.subr.bf16.mxu0 0
    %743 = vmatpush1.bf16.msra.mxu0 %v379
    %744 = vmatprep.subr.bf16.mxu0 0
    %745 = vmatpush2.bf16.msra.mxu0 0
    %746 = vmatprep.subr.bf16.mxu0 0
    %747 = vmatpush2.bf16.msra.mxu0 0
    %748 = vmatprep.subr.bf16.mxu0 0
    %749 = vmatpush2.bf16.msra.mxu0 0
    %750 = vmatprep.subr.bf16.mxu0 0
    %751 = vmatpush2.bf16.msra.mxu0 0
    %752 = vmatprep.subr.bf16.mxu0 0
    %753 = vmatpush2.bf16.msra.mxu0 0
    %754 = vmatprep.subr.bf16.mxu0 0
    %755 = vmatpush2.bf16.msra.mxu0 0
    %756 = vmatprep.subr.bf16.mxu0 0
    %757 = vmatpush2.bf16.msra.mxu0 0
    %758 = vmatprep.subr.bf16.mxu0 0
    %759 = vmatpush2.bf16.msra.mxu0 0
    %760 = vmatprep.mubr.bf16.mxu0 0
    %761 = vmatmul.mubr.bf16.gmra.mxu0 %v517
    %v762 = vpop.f32.mrf.mxu0
    %v763 = vadd.f32 0.0, %v762
    %v764 = vpop.f32.mrf.mxu0
    %v765 = vpop.f32.mrf.mxu0
    %v766 = vpop.f32.mrf.mxu0
    %767 = vdwg.mxu0
    %v768 = vadd.f32 %v439, %v763
    %769 = vmatprep.subr.bf16.mxu0 0
    %770 = vmatpush1.bf16.msra.mxu0 %v598
    %771 = vmatprep.subr.bf16.mxu0 0
    %772 = vmatpush1.bf16.msra.mxu0 %v597
    %773 = vmatprep.subr.bf16.mxu0 0
    %774 = vmatpush1.bf16.msra.mxu0 %v596
    %775 = vmatprep.subr.bf16.mxu0 0
    %776 = vmatpush1.bf16.msra.mxu0 %v595
    %777 = vmatprep.subr.bf16.mxu0 0
    %778 = vmatpush1.bf16.msra.mxu0 %v594
    %779 = vmatprep.subr.bf16.mxu0 0
    %780 = vmatpush1.bf16.msra.mxu0 %v593
    %781 = vmatprep.subr.bf16.mxu0 0
    %782 = vmatpush1.bf16.msra.mxu0 %v592
    %783 = vmatprep.subr.bf16.mxu0 0
    %784 = vmatpush1.bf16.msra.mxu0 %v591
    %785 = vmatprep.subr.bf16.mxu0 0
    %786 = vmatpush2.bf16.msra.mxu0 0
    %787 = vmatprep.subr.bf16.mxu0 0
    %788 = vmatpush2.bf16.msra.mxu0 0
    %789 = vmatprep.subr.bf16.mxu0 0
    %790 = vmatpush2.bf16.msra.mxu0 0
    %791 = vmatprep.subr.bf16.mxu0 0
    %792 = vmatpush2.bf16.msra.mxu0 0
    %793 = vmatprep.subr.bf16.mxu0 0
    %794 = vmatpush2.bf16.msra.mxu0 0
    %795 = vmatprep.subr.bf16.mxu0 0
    %796 = vmatpush2.bf16.msra.mxu0 0
    %797 = vmatprep.subr.bf16.mxu0 0
    %798 = vmatpush2.bf16.msra.mxu0 0
    %799 = vmatprep.subr.bf16.mxu0 0
    %800 = vmatpush2.bf16.msra.mxu0 0
    %801 = vmatprep.mubr.bf16.mxu0 0
    %802 = vmatmul.mubr.bf16.gmra.mxu0 %v666
    %v803 = vpop.f32.mrf.mxu0
    %v804 = vadd.f32 0.0, %v803
    %v805 = vpop.f32.mrf.mxu0
    %v806 = vpop.f32.mrf.mxu0
    %v807 = vpop.f32.mrf.mxu0
    %808 = vdwg.mxu0
    %v809 = vadd.f32 %v768, %v804
    %v810 = vxor.u32 %v809, 2147483648
    %v811 = vmul.f32 %v810, 1.442695
    %v812 = vpow.pop %v811
    %v813 = vadd.f32 %v812, 1.0
    %v814 = vrcp.pop %v813
    %v815 = vmul.f32 1.0, %v814
    %v816 = vtanh.pop %v809
    %817 = vrot.lane.b32.xlu0 %v816, 64
    %v818 = vpop.permute.xlu0 %817
    %819 = vrot.lane.b32.xlu0 %v815, 32
    %v820 = vpop.permute.xlu0 %819
    %821 = vrot.lane.b32.xlu0 %v815, 96
    %v822 = vpop.permute.xlu0 %821
    %v823 = vmul.f32 %v822, %v663
    %v824 = vmul.f32 %v815, %v818
    %v825 = vadd.f32 %v823, %v824
    %v826 = vtanh.pop %v825
    %v827 = vmul.f32 %v820, %v826
    %v828 = vpack.c.bf16 %v827, %v827
    %v829 = vld [vmem:[#allocation2 + $0x20] sm:$0xff]
    %830 = vmatprep.subr.bf16.mxu0 0
    %831 = vmatpush1.bf16.msra.mxu0 %v278
    %832 = vmatprep.subr.bf16.mxu0 0
    %833 = vmatpush1.bf16.msra.mxu0 %v277
    %834 = vmatprep.subr.bf16.mxu0 0
    %835 = vmatpush1.bf16.msra.mxu0 %v276
    %836 = vmatprep.subr.bf16.mxu0 0
    %837 = vmatpush1.bf16.msra.mxu0 %v275
    %838 = vmatprep.subr.bf16.mxu0 0
    %839 = vmatpush1.bf16.msra.mxu0 %v274
    %840 = vmatprep.subr.bf16.mxu0 0
    %841 = vmatpush1.bf16.msra.mxu0 %v273
    %842 = vmatprep.subr.bf16.mxu0 0
    %843 = vmatpush1.bf16.msra.mxu0 %v272
    %844 = vmatprep.subr.bf16.mxu0 0
    %845 = vmatpush1.bf16.msra.mxu0 %v271
    %846 = vmatprep.subr.bf16.mxu0 0
    %847 = vmatpush2.bf16.msra.mxu0 0
    %848 = vmatprep.subr.bf16.mxu0 0
    %849 = vmatpush2.bf16.msra.mxu0 0
    %850 = vmatprep.subr.bf16.mxu0 0
    %851 = vmatpush2.bf16.msra.mxu0 0
    %852 = vmatprep.subr.bf16.mxu0 0
    %853 = vmatpush2.bf16.msra.mxu0 0
    %854 = vmatprep.subr.bf16.mxu0 0
    %855 = vmatpush2.bf16.msra.mxu0 0
    %856 = vmatprep.subr.bf16.mxu0 0
    %857 = vmatpush2.bf16.msra.mxu0 0
    %858 = vmatprep.subr.bf16.mxu0 0
    %859 = vmatpush2.bf16.msra.mxu0 0
    %860 = vmatprep.subr.bf16.mxu0 0
    %861 = vmatpush2.bf16.msra.mxu0 0
    %862 = vmatprep.mubr.bf16.mxu0 0
    %863 = vmatmul.mubr.bf16.gmra.mxu0 %v727
    %v864 = vpop.f32.mrf.mxu0
    %v865 = vadd.f32 0.0, %v864
    %v866 = vpop.f32.mrf.mxu0
    %v867 = vpop.f32.mrf.mxu0
    %v868 = vpop.f32.mrf.mxu0
    %869 = vdwg.mxu0
    %v870 = vadd.f32 %v829, %v865
    %v871 = vxor.u32 %v870, 2147483648
    %v872 = vmul.f32 %v871, 1.442695
    %v873 = vpow.pop %v872
    %v874 = vadd.f32 %v873, 1.0
    %v875 = vrcp.pop %v874
    %v876 = vmul.f32 1.0, %v875
    %v877 = vtanh.pop %v870
    %878 = vrot.lane.b32.xlu0 %v877, 64
    %v879 = vpop.permute.xlu0 %878
    %880 = vrot.lane.b32.xlu0 %v876, 32
    %v881 = vpop.permute.xlu0 %880
    %882 = vrot.lane.b32.xlu0 %v876, 96
    %v883 = vpop.permute.xlu0 %882
    %v884 = vmul.f32 %v883, %v724
    %v885 = vmul.f32 %v876, %v879
    %v886 = vadd.f32 %v884, %v885
    %v887 = vtanh.pop %v886
    %v888 = vmul.f32 %v881, %v887
    %v889 = vpack.c.bf16 %v888, %v888
    %890 = vmatprep.subr.bf16.mxu0 0
    %891 = vmatpush1.bf16.msra.mxu0 %v386
    %892 = vmatprep.subr.bf16.mxu0 0
    %893 = vmatpush1.bf16.msra.mxu0 %v385
    %894 = vmatprep.subr.bf16.mxu0 0
    %895 = vmatpush1.bf16.msra.mxu0 %v384
    %896 = vmatprep.subr.bf16.mxu0 0
    %897 = vmatpush1.bf16.msra.mxu0 %v383
    %898 = vmatprep.subr.bf16.mxu0 0
    %899 = vmatpush1.bf16.msra.mxu0 %v382
    %900 = vmatprep.subr.bf16.mxu0 0
    %901 = vmatpush1.bf16.msra.mxu0 %v381
    %902 = vmatprep.subr.bf16.mxu0 0
    %903 = vmatpush1.bf16.msra.mxu0 %v380
    %904 = vmatprep.subr.bf16.mxu0 0
    %905 = vmatpush1.bf16.msra.mxu0 %v379
    %906 = vmatprep.subr.bf16.mxu0 0
    %907 = vmatpush2.bf16.msra.mxu0 0
    %908 = vmatprep.subr.bf16.mxu0 0
    %909 = vmatpush2.bf16.msra.mxu0 0
    %910 = vmatprep.subr.bf16.mxu0 0
    %911 = vmatpush2.bf16.msra.mxu0 0
    %912 = vmatprep.subr.bf16.mxu0 0
    %913 = vmatpush2.bf16.msra.mxu0 0
    %914 = vmatprep.subr.bf16.mxu0 0
    %915 = vmatpush2.bf16.msra.mxu0 0
    %916 = vmatprep.subr.bf16.mxu0 0
    %917 = vmatpush2.bf16.msra.mxu0 0
    %918 = vmatprep.subr.bf16.mxu0 0
    %919 = vmatpush2.bf16.msra.mxu0 0
    %920 = vmatprep.subr.bf16.mxu0 0
    %921 = vmatpush2.bf16.msra.mxu0 0
    %922 = vmatprep.mubr.bf16.mxu0 0
    %923 = vmatmul.mubr.bf16.gmra.mxu0 %v727
    %v924 = vpop.f32.mrf.mxu0
    %v925 = vadd.f32 0.0, %v924
    %v926 = vpop.f32.mrf.mxu0
    %v927 = vpop.f32.mrf.mxu0
    %v928 = vpop.f32.mrf.mxu0
    %929 = vdwg.mxu0
    %v930 = vadd.f32 %v439, %v925
    %931 = vmatprep.subr.bf16.mxu0 0
    %932 = vmatpush1.bf16.msra.mxu0 %v598
    %933 = vmatprep.subr.bf16.mxu0 0
    %934 = vmatpush1.bf16.msra.mxu0 %v597
    %935 = vmatprep.subr.bf16.mxu0 0
    %936 = vmatpush1.bf16.msra.mxu0 %v596
    %937 = vmatprep.subr.bf16.mxu0 0
    %938 = vmatpush1.bf16.msra.mxu0 %v595
    %939 = vmatprep.subr.bf16.mxu0 0
    %940 = vmatpush1.bf16.msra.mxu0 %v594
    %941 = vmatprep.subr.bf16.mxu0 0
    %942 = vmatpush1.bf16.msra.mxu0 %v593
    %943 = vmatprep.subr.bf16.mxu0 0
    %944 = vmatpush1.bf16.msra.mxu0 %v592
    %945 = vmatprep.subr.bf16.mxu0 0
    %946 = vmatpush1.bf16.msra.mxu0 %v591
    %947 = vmatprep.subr.bf16.mxu0 0
    %948 = vmatpush2.bf16.msra.mxu0 0
    %949 = vmatprep.subr.bf16.mxu0 0
    %950 = vmatpush2.bf16.msra.mxu0 0
    %951 = vmatprep.subr.bf16.mxu0 0
    %952 = vmatpush2.bf16.msra.mxu0 0
    %953 = vmatprep.subr.bf16.mxu0 0
    %954 = vmatpush2.bf16.msra.mxu0 0
    %955 = vmatprep.subr.bf16.mxu0 0
    %956 = vmatpush2.bf16.msra.mxu0 0
    %957 = vmatprep.subr.bf16.mxu0 0
    %958 = vmatpush2.bf16.msra.mxu0 0
    %959 = vmatprep.subr.bf16.mxu0 0
    %960 = vmatpush2.bf16.msra.mxu0 0
    %961 = vmatprep.subr.bf16.mxu0 0
    %962 = vmatpush2.bf16.msra.mxu0 0
    %963 = vmatprep.mubr.bf16.mxu0 0
    %964 = vmatmul.mubr.bf16.gmra.mxu0 %v828
    %v965 = vpop.f32.mrf.mxu0
    %v966 = vadd.f32 0.0, %v965
    %v967 = vpop.f32.mrf.mxu0
    %v968 = vpop.f32.mrf.mxu0
    %v969 = vpop.f32.mrf.mxu0
    %970 = vdwg.mxu0
    %v971 = vadd.f32 %v930, %v966
    %v972 = vxor.u32 %v971, 2147483648
    %v973 = vmul.f32 %v972, 1.442695
    %v974 = vpow.pop %v973
    %v975 = vadd.f32 %v974, 1.0
    %v976 = vrcp.pop %v975
    %v977 = vmul.f32 1.0, %v976
    %v978 = vtanh.pop %v971
    %979 = vrot.lane.b32.xlu0 %v978, 64
    %v980 = vpop.permute.xlu0 %979
    %981 = vrot.lane.b32.xlu0 %v977, 32
    %v982 = vpop.permute.xlu0 %981
    %983 = vrot.lane.b32.xlu0 %v977, 96
    %v984 = vpop.permute.xlu0 %983
    %v985 = vmul.f32 %v984, %v825
    %v986 = vmul.f32 %v977, %v980
    %v987 = vadd.f32 %v985, %v986
    %v988 = vtanh.pop %v987
    %v989 = vmul.f32 %v982, %v988
    %v990 = vpack.c.bf16 %v989, %v989
    %v991 = vld [vmem:[#allocation2 + $0x28] sm:$0xff]
    %992 = vmatprep.subr.bf16.mxu0 0
    %993 = vmatpush1.bf16.msra.mxu0 %v278
    %994 = vmatprep.subr.bf16.mxu0 0
    %995 = vmatpush1.bf16.msra.mxu0 %v277
    %996 = vmatprep.subr.bf16.mxu0 0
    %997 = vmatpush1.bf16.msra.mxu0 %v276
    %998 = vmatprep.subr.bf16.mxu0 0
    %999 = vmatpush1.bf16.msra.mxu0 %v275
    %1000 = vmatprep.subr.bf16.mxu0 0
    %1001 = vmatpush1.bf16.msra.mxu0 %v274
    %1002 = vmatprep.subr.bf16.mxu0 0
    %1003 = vmatpush1.bf16.msra.mxu0 %v273
    %1004 = vmatprep.subr.bf16.mxu0 0
    %1005 = vmatpush1.bf16.msra.mxu0 %v272
    %1006 = vmatprep.subr.bf16.mxu0 0
    %1007 = vmatpush1.bf16.msra.mxu0 %v271
    %1008 = vmatprep.subr.bf16.mxu0 0
    %1009 = vmatpush2.bf16.msra.mxu0 0
    %1010 = vmatprep.subr.bf16.mxu0 0
    %1011 = vmatpush2.bf16.msra.mxu0 0
    %1012 = vmatprep.subr.bf16.mxu0 0
    %1013 = vmatpush2.bf16.msra.mxu0 0
    %1014 = vmatprep.subr.bf16.mxu0 0
    %1015 = vmatpush2.bf16.msra.mxu0 0
    %1016 = vmatprep.subr.bf16.mxu0 0
    %1017 = vmatpush2.bf16.msra.mxu0 0
    %1018 = vmatprep.subr.bf16.mxu0 0
    %1019 = vmatpush2.bf16.msra.mxu0 0
    %1020 = vmatprep.subr.bf16.mxu0 0
    %1021 = vmatpush2.bf16.msra.mxu0 0
    %1022 = vmatprep.subr.bf16.mxu0 0
    %1023 = vmatpush2.bf16.msra.mxu0 0
    %1024 = vmatprep.mubr.bf16.mxu0 0
    %1025 = vmatmul.mubr.bf16.gmra.mxu0 %v889
    %v1026 = vpop.f32.mrf.mxu0
    %v1027 = vadd.f32 0.0, %v1026
    %v1028 = vpop.f32.mrf.mxu0
    %v1029 = vpop.f32.mrf.mxu0
    %v1030 = vpop.f32.mrf.mxu0
    %1031 = vdwg.mxu0
    %v1032 = vadd.f32 %v991, %v1027
    %v1033 = vxor.u32 %v1032, 2147483648
    %v1034 = vmul.f32 %v1033, 1.442695
    %v1035 = vpow.pop %v1034
    %v1036 = vadd.f32 %v1035, 1.0
    %v1037 = vrcp.pop %v1036
    %v1038 = vmul.f32 1.0, %v1037
    %v1039 = vtanh.pop %v1032
    %1040 = vrot.lane.b32.xlu0 %v1039, 64
    %v1041 = vpop.permute.xlu0 %1040
    %1042 = vrot.lane.b32.xlu0 %v1038, 32
    %v1043 = vpop.permute.xlu0 %1042
    %1044 = vrot.lane.b32.xlu0 %v1038, 96
    %v1045 = vpop.permute.xlu0 %1044
    %v1046 = vmul.f32 %v1045, %v886
    %v1047 = vmul.f32 %v1038, %v1041
    %v1048 = vadd.f32 %v1046, %v1047
    %v1049 = vtanh.pop %v1048
    %v1050 = vmul.f32 %v1043, %v1049
    %v1051 = vpack.c.bf16 %v1050, %v1050
    %1052 = vmatprep.subr.bf16.mxu0 0
    %1053 = vmatpush1.bf16.msra.mxu0 %v386
    %1054 = vmatprep.subr.bf16.mxu0 0
    %1055 = vmatpush1.bf16.msra.mxu0 %v385
    %1056 = vmatprep.subr.bf16.mxu0 0
    %1057 = vmatpush1.bf16.msra.mxu0 %v384
    %1058 = vmatprep.subr.bf16.mxu0 0
    %1059 = vmatpush1.bf16.msra.mxu0 %v383
    %1060 = vmatprep.subr.bf16.mxu0 0
    %1061 = vmatpush1.bf16.msra.mxu0 %v382
    %1062 = vmatprep.subr.bf16.mxu0 0
    %1063 = vmatpush1.bf16.msra.mxu0 %v381
    %1064 = vmatprep.subr.bf16.mxu0 0
    %1065 = vmatpush1.bf16.msra.mxu0 %v380
    %1066 = vmatprep.subr.bf16.mxu0 0
    %1067 = vmatpush1.bf16.msra.mxu0 %v379
    %1068 = vmatprep.subr.bf16.mxu0 0
    %1069 = vmatpush2.bf16.msra.mxu0 0
    %1070 = vmatprep.subr.bf16.mxu0 0
    %1071 = vmatpush2.bf16.msra.mxu0 0
    %1072 = vmatprep.subr.bf16.mxu0 0
    %1073 = vmatpush2.bf16.msra.mxu0 0
    %1074 = vmatprep.subr.bf16.mxu0 0
    %1075 = vmatpush2.bf16.msra.mxu0 0
    %1076 = vmatprep.subr.bf16.mxu0 0
    %1077 = vmatpush2.bf16.msra.mxu0 0
    %1078 = vmatprep.subr.bf16.mxu0 0
    %1079 = vmatpush2.bf16.msra.mxu0 0
    %1080 = vmatprep.subr.bf16.mxu0 0
    %1081 = vmatpush2.bf16.msra.mxu0 0
    %1082 = vmatprep.subr.bf16.mxu0 0
    %1083 = vmatpush2.bf16.msra.mxu0 0
    %1084 = vmatprep.mubr.bf16.mxu0 0
    %1085 = vmatmul.mubr.bf16.gmra.mxu0 %v889
    %v1086 = vpop.f32.mrf.mxu0
    %v1087 = vadd.f32 0.0, %v1086
    %v1088 = vpop.f32.mrf.mxu0
    %v1089 = vpop.f32.mrf.mxu0
    %v1090 = vpop.f32.mrf.mxu0
    %1091 = vdwg.mxu0
    %v1092 = vadd.f32 %v439, %v1087
    %1093 = vmatprep.subr.bf16.mxu0 0
    %1094 = vmatpush1.bf16.msra.mxu0 %v598
    %1095 = vmatprep.subr.bf16.mxu0 0
    %1096 = vmatpush1.bf16.msra.mxu0 %v597
    %1097 = vmatprep.subr.bf16.mxu0 0
    %1098 = vmatpush1.bf16.msra.mxu0 %v596
    %1099 = vmatprep.subr.bf16.mxu0 0
    %1100 = vmatpush1.bf16.msra.mxu0 %v595
    %1101 = vmatprep.subr.bf16.mxu0 0
    %1102 = vmatpush1.bf16.msra.mxu0 %v594
    %1103 = vmatprep.subr.bf16.mxu0 0
    %1104 = vmatpush1.bf16.msra.mxu0 %v593
    %1105 = vmatprep.subr.bf16.mxu0 0
    %1106 = vmatpush1.bf16.msra.mxu0 %v592
    %1107 = vmatprep.subr.bf16.mxu0 0
    %1108 = vmatpush1.bf16.msra.mxu0 %v591
    %1109 = vmatprep.subr.bf16.mxu0 0
    %1110 = vmatpush2.bf16.msra.mxu0 0
    %1111 = vmatprep.subr.bf16.mxu0 0
    %1112 = vmatpush2.bf16.msra.mxu0 0
    %1113 = vmatprep.subr.bf16.mxu0 0
    %1114 = vmatpush2.bf16.msra.mxu0 0
    %1115 = vmatprep.subr.bf16.mxu0 0
    %1116 = vmatpush2.bf16.msra.mxu0 0
    %1117 = vmatprep.subr.bf16.mxu0 0
    %1118 = vmatpush2.bf16.msra.mxu0 0
    %1119 = vmatprep.subr.bf16.mxu0 0
    %1120 = vmatpush2.bf16.msra.mxu0 0
    %1121 = vmatprep.subr.bf16.mxu0 0
    %1122 = vmatpush2.bf16.msra.mxu0 0
    %1123 = vmatprep.subr.bf16.mxu0 0
    %1124 = vmatpush2.bf16.msra.mxu0 0
    %1125 = vmatprep.mubr.bf16.mxu0 0
    %1126 = vmatmul.mubr.bf16.gmra.mxu0 %v990
    %v1127 = vpop.f32.mrf.mxu0
    %v1128 = vadd.f32 0.0, %v1127
    %v1129 = vpop.f32.mrf.mxu0
    %v1130 = vpop.f32.mrf.mxu0
    %v1131 = vpop.f32.mrf.mxu0
    %1132 = vdwg.mxu0
    %v1133 = vadd.f32 %v1092, %v1128
    %v1134 = vxor.u32 %v1133, 2147483648
    %v1135 = vmul.f32 %v1134, 1.442695
    %v1136 = vpow.pop %v1135
    %v1137 = vadd.f32 %v1136, 1.0
    %v1138 = vrcp.pop %v1137
    %v1139 = vmul.f32 1.0, %v1138
    %v1140 = vtanh.pop %v1133
    %1141 = vrot.lane.b32.xlu0 %v1140, 64
    %v1142 = vpop.permute.xlu0 %1141
    %1143 = vrot.lane.b32.xlu0 %v1139, 32
    %v1144 = vpop.permute.xlu0 %1143
    %1145 = vrot.lane.b32.xlu0 %v1139, 96
    %v1146 = vpop.permute.xlu0 %1145
    %v1147 = vmul.f32 %v1146, %v987
    %v1148 = vmul.f32 %v1139, %v1142
    %v1149 = vadd.f32 %v1147, %v1148
    %v1150 = vtanh.pop %v1149
    %v1151 = vmul.f32 %v1144, %v1150
    %v1152 = vpack.c.bf16 %v1151, %v1151
    %v1153 = vld [vmem:[#allocation2 + $0x30] sm:$0xff]
    %1154 = vmatprep.subr.bf16.mxu0 0
    %1155 = vmatpush1.bf16.msra.mxu0 %v278
    %1156 = vmatprep.subr.bf16.mxu0 0
    %1157 = vmatpush1.bf16.msra.mxu0 %v277
    %1158 = vmatprep.subr.bf16.mxu0 0
    %1159 = vmatpush1.bf16.msra.mxu0 %v276
    %1160 = vmatprep.subr.bf16.mxu0 0
    %1161 = vmatpush1.bf16.msra.mxu0 %v275
    %1162 = vmatprep.subr.bf16.mxu0 0
    %1163 = vmatpush1.bf16.msra.mxu0 %v274
    %1164 = vmatprep.subr.bf16.mxu0 0
    %1165 = vmatpush1.bf16.msra.mxu0 %v273
    %1166 = vmatprep.subr.bf16.mxu0 0
    %1167 = vmatpush1.bf16.msra.mxu0 %v272
    %1168 = vmatprep.subr.bf16.mxu0 0
    %1169 = vmatpush1.bf16.msra.mxu0 %v271
    %1170 = vmatprep.subr.bf16.mxu0 0
    %1171 = vmatpush2.bf16.msra.mxu0 0
    %1172 = vmatprep.subr.bf16.mxu0 0
    %1173 = vmatpush2.bf16.msra.mxu0 0
    %1174 = vmatprep.subr.bf16.mxu0 0
    %1175 = vmatpush2.bf16.msra.mxu0 0
    %1176 = vmatprep.subr.bf16.mxu0 0
    %1177 = vmatpush2.bf16.msra.mxu0 0
    %1178 = vmatprep.subr.bf16.mxu0 0
    %1179 = vmatpush2.bf16.msra.mxu0 0
    %1180 = vmatprep.subr.bf16.mxu0 0
    %1181 = vmatpush2.bf16.msra.mxu0 0
    %1182 = vmatprep.subr.bf16.mxu0 0
    %1183 = vmatpush2.bf16.msra.mxu0 0
    %1184 = vmatprep.subr.bf16.mxu0 0
    %1185 = vmatpush2.bf16.msra.mxu0 0
    %1186 = vmatprep.mubr.bf16.mxu0 0
    %1187 = vmatmul.mubr.bf16.gmra.mxu0 %v1051
    %v1188 = vpop.f32.mrf.mxu0
    %v1189 = vadd.f32 0.0, %v1188
    %v1190 = vpop.f32.mrf.mxu0
    %v1191 = vpop.f32.mrf.mxu0
    %v1192 = vpop.f32.mrf.mxu0
    %1193 = vdwg.mxu0
    %v1194 = vadd.f32 %v1153, %v1189
    %v1195 = vxor.u32 %v1194, 2147483648
    %v1196 = vmul.f32 %v1195, 1.442695
    %v1197 = vpow.pop %v1196
    %v1198 = vadd.f32 %v1197, 1.0
    %v1199 = vrcp.pop %v1198
    %v1200 = vmul.f32 1.0, %v1199
    %v1201 = vtanh.pop %v1194
    %1202 = vrot.lane.b32.xlu0 %v1201, 64
    %v1203 = vpop.permute.xlu0 %1202
    %1204 = vrot.lane.b32.xlu0 %v1200, 32
    %v1205 = vpop.permute.xlu0 %1204
    %1206 = vrot.lane.b32.xlu0 %v1200, 96
    %v1207 = vpop.permute.xlu0 %1206
    %v1208 = vmul.f32 %v1207, %v1048
    %v1209 = vmul.f32 %v1200, %v1203
    %v1210 = vadd.f32 %v1208, %v1209
    %v1211 = vtanh.pop %v1210
    %v1212 = vmul.f32 %v1205, %v1211
    %v1213 = vpack.c.bf16 %v1212, %v1212
    %1214 = vmatprep.subr.bf16.mxu0 0
    %1215 = vmatpush1.bf16.msra.mxu0 %v386
    %1216 = vmatprep.subr.bf16.mxu0 0
    %1217 = vmatpush1.bf16.msra.mxu0 %v385
    %1218 = vmatprep.subr.bf16.mxu0 0
    %1219 = vmatpush1.bf16.msra.mxu0 %v384
    %1220 = vmatprep.subr.bf16.mxu0 0
    %1221 = vmatpush1.bf16.msra.mxu0 %v383
    %1222 = vmatprep.subr.bf16.mxu0 0
    %1223 = vmatpush1.bf16.msra.mxu0 %v382
    %1224 = vmatprep.subr.bf16.mxu0 0
    %1225 = vmatpush1.bf16.msra.mxu0 %v381
    %1226 = vmatprep.subr.bf16.mxu0 0
    %1227 = vmatpush1.bf16.msra.mxu0 %v380
    %1228 = vmatprep.subr.bf16.mxu0 0
    %1229 = vmatpush1.bf16.msra.mxu0 %v379
    %1230 = vmatprep.subr.bf16.mxu0 0
    %1231 = vmatpush2.bf16.msra.mxu0 0
    %1232 = vmatprep.subr.bf16.mxu0 0
    %1233 = vmatpush2.bf16.msra.mxu0 0
    %1234 = vmatprep.subr.bf16.mxu0 0
    %1235 = vmatpush2.bf16.msra.mxu0 0
    %1236 = vmatprep.subr.bf16.mxu0 0
    %1237 = vmatpush2.bf16.msra.mxu0 0
    %1238 = vmatprep.subr.bf16.mxu0 0
    %1239 = vmatpush2.bf16.msra.mxu0 0
    %1240 = vmatprep.subr.bf16.mxu0 0
    %1241 = vmatpush2.bf16.msra.mxu0 0
    %1242 = vmatprep.subr.bf16.mxu0 0
    %1243 = vmatpush2.bf16.msra.mxu0 0
    %1244 = vmatprep.subr.bf16.mxu0 0
    %1245 = vmatpush2.bf16.msra.mxu0 0
    %1246 = vmatprep.mubr.bf16.mxu0 0
    %1247 = vmatmul.mubr.bf16.gmra.mxu0 %v1051
    %v1248 = vpop.f32.mrf.mxu0
    %v1249 = vadd.f32 0.0, %v1248
    %v1250 = vpop.f32.mrf.mxu0
    %v1251 = vpop.f32.mrf.mxu0
    %v1252 = vpop.f32.mrf.mxu0
    %1253 = vdwg.mxu0
    %v1254 = vadd.f32 %v439, %v1249
    %1255 = vmatprep.subr.bf16.mxu0 0
    %1256 = vmatpush1.bf16.msra.mxu0 %v598
    %1257 = vmatprep.subr.bf16.mxu0 0
    %1258 = vmatpush1.bf16.msra.mxu0 %v597
    %1259 = vmatprep.subr.bf16.mxu0 0
    %1260 = vmatpush1.bf16.msra.mxu0 %v596
    %1261 = vmatprep.subr.bf16.mxu0 0
    %1262 = vmatpush1.bf16.msra.mxu0 %v595
    %1263 = vmatprep.subr.bf16.mxu0 0
    %1264 = vmatpush1.bf16.msra.mxu0 %v594
    %1265 = vmatprep.subr.bf16.mxu0 0
    %1266 = vmatpush1.bf16.msra.mxu0 %v593
    %1267 = vmatprep.subr.bf16.mxu0 0
    %1268 = vmatpush1.bf16.msra.mxu0 %v592
    %1269 = vmatprep.subr.bf16.mxu0 0
    %1270 = vmatpush1.bf16.msra.mxu0 %v591
    %1271 = vmatprep.subr.bf16.mxu0 0
    %1272 = vmatpush2.bf16.msra.mxu0 0
    %1273 = vmatprep.subr.bf16.mxu0 0
    %1274 = vmatpush2.bf16.msra.mxu0 0
    %1275 = vmatprep.subr.bf16.mxu0 0
    %1276 = vmatpush2.bf16.msra.mxu0 0
    %1277 = vmatprep.subr.bf16.mxu0 0
    %1278 = vmatpush2.bf16.msra.mxu0 0
    %1279 = vmatprep.subr.bf16.mxu0 0
    %1280 = vmatpush2.bf16.msra.mxu0 0
    %1281 = vmatprep.subr.bf16.mxu0 0
    %1282 = vmatpush2.bf16.msra.mxu0 0
    %1283 = vmatprep.subr.bf16.mxu0 0
    %1284 = vmatpush2.bf16.msra.mxu0 0
    %1285 = vmatprep.subr.bf16.mxu0 0
    %1286 = vmatpush2.bf16.msra.mxu0 0
    %1287 = vmatprep.mubr.bf16.mxu0 0
    %1288 = vmatmul.mubr.bf16.gmra.mxu0 %v1152
    %v1289 = vpop.f32.mrf.mxu0
    %v1290 = vadd.f32 0.0, %v1289
    %v1291 = vpop.f32.mrf.mxu0
    %v1292 = vpop.f32.mrf.mxu0
    %v1293 = vpop.f32.mrf.mxu0
    %1294 = vdwg.mxu0
    %v1295 = vadd.f32 %v1254, %v1290
    %v1296 = vxor.u32 %v1295, 2147483648
    %v1297 = vmul.f32 %v1296, 1.442695
    %v1298 = vpow.pop %v1297
    %v1299 = vadd.f32 %v1298, 1.0
    %v1300 = vrcp.pop %v1299
    %v1301 = vmul.f32 1.0, %v1300
    %v1302 = vtanh.pop %v1295
    %1303 = vrot.lane.b32.xlu0 %v1302, 64
    %v1304 = vpop.permute.xlu0 %1303
    %1305 = vrot.lane.b32.xlu0 %v1301, 32
    %v1306 = vpop.permute.xlu0 %1305
    %1307 = vrot.lane.b32.xlu0 %v1301, 96
    %v1308 = vpop.permute.xlu0 %1307
    %v1309 = vmul.f32 %v1308, %v1149
    %v1310 = vmul.f32 %v1301, %v1304
    %v1311 = vadd.f32 %v1309, %v1310
    %v1312 = vtanh.pop %v1311
    %v1313 = vmul.f32 %v1306, %v1312
    %v1314 = vpack.c.bf16 %v1313, %v1313
    %v1315 = vld [vmem:[#allocation2 + $0x38] sm:$0xff]
    %1316 = vmatprep.subr.bf16.mxu0 0
    %1317 = vmatpush1.bf16.msra.mxu0 %v278
    %1318 = vmatprep.subr.bf16.mxu0 0
    %1319 = vmatpush1.bf16.msra.mxu0 %v277
    %1320 = vmatprep.subr.bf16.mxu0 0
    %1321 = vmatpush1.bf16.msra.mxu0 %v276
    %1322 = vmatprep.subr.bf16.mxu0 0
    %1323 = vmatpush1.bf16.msra.mxu0 %v275
    %1324 = vmatprep.subr.bf16.mxu0 0
    %1325 = vmatpush1.bf16.msra.mxu0 %v274
    %1326 = vmatprep.subr.bf16.mxu0 0
    %1327 = vmatpush1.bf16.msra.mxu0 %v273
    %1328 = vmatprep.subr.bf16.mxu0 0
    %1329 = vmatpush1.bf16.msra.mxu0 %v272
    %1330 = vmatprep.subr.bf16.mxu0 0
    %1331 = vmatpush1.bf16.msra.mxu0 %v271
    %1332 = vmatprep.subr.bf16.mxu0 0
    %1333 = vmatpush2.bf16.msra.mxu0 0
    %1334 = vmatprep.subr.bf16.mxu0 0
    %1335 = vmatpush2.bf16.msra.mxu0 0
    %1336 = vmatprep.subr.bf16.mxu0 0
    %1337 = vmatpush2.bf16.msra.mxu0 0
    %1338 = vmatprep.subr.bf16.mxu0 0
    %1339 = vmatpush2.bf16.msra.mxu0 0
    %1340 = vmatprep.subr.bf16.mxu0 0
    %1341 = vmatpush2.bf16.msra.mxu0 0
    %1342 = vmatprep.subr.bf16.mxu0 0
    %1343 = vmatpush2.bf16.msra.mxu0 0
    %1344 = vmatprep.subr.bf16.mxu0 0
    %1345 = vmatpush2.bf16.msra.mxu0 0
    %1346 = vmatprep.subr.bf16.mxu0 0
    %1347 = vmatpush2.bf16.msra.mxu0 0
    %1348 = vmatprep.mubr.bf16.mxu0 0
    %1349 = vmatmul.mubr.bf16.gmra.mxu0 %v1213
    %v1350 = vpop.f32.mrf.mxu0
    %v1351 = vadd.f32 0.0, %v1350
    %v1352 = vpop.f32.mrf.mxu0
    %v1353 = vpop.f32.mrf.mxu0
    %v1354 = vpop.f32.mrf.mxu0
    %1355 = vdwg.mxu0
    %v1356 = vadd.f32 %v1315, %v1351
    %v1357 = vxor.u32 %v1356, 2147483648
    %v1358 = vmul.f32 %v1357, 1.442695
    %v1359 = vpow.pop %v1358
    %v1360 = vadd.f32 %v1359, 1.0
    %v1361 = vrcp.pop %v1360
    %v1362 = vmul.f32 1.0, %v1361
    %v1363 = vtanh.pop %v1356
    %1364 = vrot.lane.b32.xlu0 %v1363, 64
    %v1365 = vpop.permute.xlu0 %1364
    %1366 = vrot.lane.b32.xlu0 %v1362, 32
    %v1367 = vpop.permute.xlu0 %1366
    %1368 = vrot.lane.b32.xlu0 %v1362, 96
    %v1369 = vpop.permute.xlu0 %1368
    %v1370 = vmul.f32 %v1369, %v1210
    %v1371 = vmul.f32 %v1362, %v1365
    %v1372 = vadd.f32 %v1370, %v1371
    %v1373 = vtanh.pop %v1372
    %v1374 = vmul.f32 %v1367, %v1373
    %v1375 = vpack.c.bf16 %v1374, %v1374
    %1376 = vmatprep.subr.bf16.mxu0 0
    %1377 = vmatpush1.bf16.msra.mxu0 %v386
    %1378 = vmatprep.subr.bf16.mxu0 0
    %1379 = vmatpush1.bf16.msra.mxu0 %v385
    %1380 = vmatprep.subr.bf16.mxu0 0
    %1381 = vmatpush1.bf16.msra.mxu0 %v384
    %1382 = vmatprep.subr.bf16.mxu0 0
    %1383 = vmatpush1.bf16.msra.mxu0 %v383
    %1384 = vmatprep.subr.bf16.mxu0 0
    %1385 = vmatpush1.bf16.msra.mxu0 %v382
    %1386 = vmatprep.subr.bf16.mxu0 0
    %1387 = vmatpush1.bf16.msra.mxu0 %v381
    %1388 = vmatprep.subr.bf16.mxu0 0
    %1389 = vmatpush1.bf16.msra.mxu0 %v380
    %1390 = vmatprep.subr.bf16.mxu0 0
    %1391 = vmatpush1.bf16.msra.mxu0 %v379
    %1392 = vmatprep.subr.bf16.mxu0 0
    %1393 = vmatpush2.bf16.msra.mxu0 0
    %1394 = vmatprep.subr.bf16.mxu0 0
    %1395 = vmatpush2.bf16.msra.mxu0 0
    %1396 = vmatprep.subr.bf16.mxu0 0
    %1397 = vmatpush2.bf16.msra.mxu0 0
    %1398 = vmatprep.subr.bf16.mxu0 0
    %1399 = vmatpush2.bf16.msra.mxu0 0
    %1400 = vmatprep.subr.bf16.mxu0 0
    %1401 = vmatpush2.bf16.msra.mxu0 0
    %1402 = vmatprep.subr.bf16.mxu0 0
    %1403 = vmatpush2.bf16.msra.mxu0 0
    %1404 = vmatprep.subr.bf16.mxu0 0
    %1405 = vmatpush2.bf16.msra.mxu0 0
    %1406 = vmatprep.subr.bf16.mxu0 0
    %1407 = vmatpush2.bf16.msra.mxu0 0
    %1408 = vmatprep.mubr.bf16.mxu0 0
    %1409 = vmatmul.mubr.bf16.gmra.mxu0 %v1213
    %v1410 = vpop.f32.mrf.mxu0
    %v1411 = vadd.f32 0.0, %v1410
    %v1412 = vpop.f32.mrf.mxu0
    %v1413 = vpop.f32.mrf.mxu0
    %v1414 = vpop.f32.mrf.mxu0
    %1415 = vdwg.mxu0
    %v1416 = vadd.f32 %v439, %v1411
    %1417 = vmatprep.subr.bf16.mxu0 0
    %1418 = vmatpush1.bf16.msra.mxu0 %v598
    %1419 = vmatprep.subr.bf16.mxu0 0
    %1420 = vmatpush1.bf16.msra.mxu0 %v597
    %1421 = vmatprep.subr.bf16.mxu0 0
    %1422 = vmatpush1.bf16.msra.mxu0 %v596
    %1423 = vmatprep.subr.bf16.mxu0 0
    %1424 = vmatpush1.bf16.msra.mxu0 %v595
    %1425 = vmatprep.subr.bf16.mxu0 0
    %1426 = vmatpush1.bf16.msra.mxu0 %v594
    %1427 = vmatprep.subr.bf16.mxu0 0
    %1428 = vmatpush1.bf16.msra.mxu0 %v593
    %1429 = vmatprep.subr.bf16.mxu0 0
    %1430 = vmatpush1.bf16.msra.mxu0 %v592
    %1431 = vmatprep.subr.bf16.mxu0 0
    %1432 = vmatpush1.bf16.msra.mxu0 %v591
    %1433 = vmatprep.subr.bf16.mxu0 0
    %1434 = vmatpush2.bf16.msra.mxu0 0
    %1435 = vmatprep.subr.bf16.mxu0 0
    %1436 = vmatpush2.bf16.msra.mxu0 0
    %1437 = vmatprep.subr.bf16.mxu0 0
    %1438 = vmatpush2.bf16.msra.mxu0 0
    %1439 = vmatprep.subr.bf16.mxu0 0
    %1440 = vmatpush2.bf16.msra.mxu0 0
    %1441 = vmatprep.subr.bf16.mxu0 0
    %1442 = vmatpush2.bf16.msra.mxu0 0
    %1443 = vmatprep.subr.bf16.mxu0 0
    %1444 = vmatpush2.bf16.msra.mxu0 0
    %1445 = vmatprep.subr.bf16.mxu0 0
    %1446 = vmatpush2.bf16.msra.mxu0 0
    %1447 = vmatprep.subr.bf16.mxu0 0
    %1448 = vmatpush2.bf16.msra.mxu0 0
    %1449 = vmatprep.mubr.bf16.mxu0 0
    %1450 = vmatmul.mubr.bf16.gmra.mxu0 %v1314
    %v1451 = vpop.f32.mrf.mxu0
    %v1452 = vadd.f32 0.0, %v1451
    %v1453 = vpop.f32.mrf.mxu0
    %v1454 = vpop.f32.mrf.mxu0
    %v1455 = vpop.f32.mrf.mxu0
    %1456 = vdwg.mxu0
    %v1457 = vadd.f32 %v1416, %v1452
    %v1458 = vxor.u32 %v1457, 2147483648
    %v1459 = vmul.f32 %v1458, 1.442695
    %v1460 = vpow.pop %v1459
    %v1461 = vadd.f32 %v1460, 1.0
    %v1462 = vrcp.pop %v1461
    %v1463 = vmul.f32 1.0, %v1462
    %v1464 = vtanh.pop %v1457
    %1465 = vrot.lane.b32.xlu0 %v1464, 64
    %v1466 = vpop.permute.xlu0 %1465
    %1467 = vrot.lane.b32.xlu0 %v1463, 32
    %v1468 = vpop.permute.xlu0 %1467
    %1469 = vrot.lane.b32.xlu0 %v1463, 96
    %v1470 = vpop.permute.xlu0 %1469
    %v1471 = vmul.f32 %v1470, %v1311
    %v1472 = vmul.f32 %v1463, %v1466
    %v1473 = vadd.f32 %v1471, %v1472
    %v1474 = vtanh.pop %v1473
    %v1475 = vmul.f32 %v1468, %v1474
    %v1476 = vpack.c.bf16 %v1475, %v1475
    %1477 = vmatprep.subr.bf16.mxu0 0
    %1478 = vmatpush1.bf16.msra.mxu0 %v386
    %1479 = vmatprep.subr.bf16.mxu0 0
    %1480 = vmatpush1.bf16.msra.mxu0 %v385
    %1481 = vmatprep.subr.bf16.mxu0 0
    %1482 = vmatpush1.bf16.msra.mxu0 %v384
    %1483 = vmatprep.subr.bf16.mxu0 0
    %1484 = vmatpush1.bf16.msra.mxu0 %v383
    %1485 = vmatprep.subr.bf16.mxu0 0
    %1486 = vmatpush1.bf16.msra.mxu0 %v382
    %1487 = vmatprep.subr.bf16.mxu0 0
    %1488 = vmatpush1.bf16.msra.mxu0 %v381
    %1489 = vmatprep.subr.bf16.mxu0 0
    %1490 = vmatpush1.bf16.msra.mxu0 %v380
    %1491 = vmatprep.subr.bf16.mxu0 0
    %1492 = vmatpush1.bf16.msra.mxu0 %v379
    %1493 = vmatprep.subr.bf16.mxu0 0
    %1494 = vmatpush2.bf16.msra.mxu0 0
    %1495 = vmatprep.subr.bf16.mxu0 0
    %1496 = vmatpush2.bf16.msra.mxu0 0
    %1497 = vmatprep.subr.bf16.mxu0 0
    %1498 = vmatpush2.bf16.msra.mxu0 0
    %1499 = vmatprep.subr.bf16.mxu0 0
    %1500 = vmatpush2.bf16.msra.mxu0 0
    %1501 = vmatprep.subr.bf16.mxu0 0
    %1502 = vmatpush2.bf16.msra.mxu0 0
    %1503 = vmatprep.subr.bf16.mxu0 0
    %1504 = vmatpush2.bf16.msra.mxu0 0
    %1505 = vmatprep.subr.bf16.mxu0 0
    %1506 = vmatpush2.bf16.msra.mxu0 0
    %1507 = vmatprep.subr.bf16.mxu0 0
    %1508 = vmatpush2.bf16.msra.mxu0 0
    %1509 = vmatprep.mubr.bf16.mxu0 0
    %1510 = vmatmul.mubr.bf16.gmra.mxu0 %v1375
    %v1511 = vpop.f32.mrf.mxu0
    %v1512 = vadd.f32 0.0, %v1511
    %v1513 = vpop.f32.mrf.mxu0
    %v1514 = vpop.f32.mrf.mxu0
    %v1515 = vpop.f32.mrf.mxu0
    %1516 = vdwg.mxu0
    %v1517 = vadd.f32 %v439, %v1512
    %1518 = vmatprep.subr.bf16.mxu0 0
    %1519 = vmatpush1.bf16.msra.mxu0 %v598
    %1520 = vmatprep.subr.bf16.mxu0 0
    %1521 = vmatpush1.bf16.msra.mxu0 %v597
    %1522 = vmatprep.subr.bf16.mxu0 0
    %1523 = vmatpush1.bf16.msra.mxu0 %v596
    %1524 = vmatprep.subr.bf16.mxu0 0
    %1525 = vmatpush1.bf16.msra.mxu0 %v595
    %1526 = vmatprep.subr.bf16.mxu0 0
    %1527 = vmatpush1.bf16.msra.mxu0 %v594
    %1528 = vmatprep.subr.bf16.mxu0 0
    %1529 = vmatpush1.bf16.msra.mxu0 %v593
    %1530 = vmatprep.subr.bf16.mxu0 0
    %1531 = vmatpush1.bf16.msra.mxu0 %v592
    %1532 = vmatprep.subr.bf16.mxu0 0
    %1533 = vmatpush1.bf16.msra.mxu0 %v591
    %1534 = vmatprep.subr.bf16.mxu0 0
    %1535 = vmatpush2.bf16.msra.mxu0 0
    %1536 = vmatprep.subr.bf16.mxu0 0
    %1537 = vmatpush2.bf16.msra.mxu0 0
    %1538 = vmatprep.subr.bf16.mxu0 0
    %1539 = vmatpush2.bf16.msra.mxu0 0
    %1540 = vmatprep.subr.bf16.mxu0 0
    %1541 = vmatpush2.bf16.msra.mxu0 0
    %1542 = vmatprep.subr.bf16.mxu0 0
    %1543 = vmatpush2.bf16.msra.mxu0 0
    %1544 = vmatprep.subr.bf16.mxu0 0
    %1545 = vmatpush2.bf16.msra.mxu0 0
    %1546 = vmatprep.subr.bf16.mxu0 0
    %1547 = vmatpush2.bf16.msra.mxu0 0
    %1548 = vmatprep.subr.bf16.mxu0 0
    %1549 = vmatpush2.bf16.msra.mxu0 0
    %1550 = vmatprep.mubr.bf16.mxu0 0
    %1551 = vmatmul.mubr.bf16.gmra.mxu0 %v1476
    %v1552 = vpop.f32.mrf.mxu0
    %v1553 = vadd.f32 0.0, %v1552
    %v1554 = vpop.f32.mrf.mxu0
    %v1555 = vpop.f32.mrf.mxu0
    %v1556 = vpop.f32.mrf.mxu0
    %1557 = vdwg.mxu0
    %v1558 = vadd.f32 %v1517, %v1553
    %v1559 = vxor.u32 %v1558, 2147483648
    %v1560 = vmul.f32 %v1559, 1.442695
    %v1561 = vpow.pop %v1560
    %v1562 = vadd.f32 %v1561, 1.0
    %v1563 = vrcp.pop %v1562
    %v1564 = vmul.f32 1.0, %v1563
    %v1565 = vtanh.pop %v1558
    %1566 = vrot.lane.b32.xlu0 %v1565, 64
    %v1567 = vpop.permute.xlu0 %1566
    %1568 = vrot.lane.b32.xlu0 %v1564, 32
    %v1569 = vpop.permute.xlu0 %1568
    %1570 = vrot.lane.b32.xlu0 %v1564, 96
    %v1571 = vpop.permute.xlu0 %1570
    %v1572 = vmul.f32 %v1571, %v1473
    %v1573 = vmul.f32 %v1564, %v1567
    %v1574 = vadd.f32 %v1572, %v1573
    %v1575 = vtanh.pop %v1574
    %v1576 = vmul.f32 %v1569, %v1575
    %v1577 = vpack.c.bf16 %v1576, %v1576
    %v1578 = vld [vmem:[%s7] sm:$0xf]
    %v1579 = vld [vmem:[%s7 + $0x4] sm:$0xf]
    %v1580 = vld [vmem:[%s7 + $0x8] sm:$0xf]
    %v1581 = vld [vmem:[%s7 + $0xc] sm:$0xf]
    %v1582 = vld [vmem:[%s7 + $0x10] sm:$0xf]
    %v1583 = vld [vmem:[%s7 + $0x14] sm:$0xf]
    %v1584 = vld [vmem:[%s7 + $0x18] sm:$0xf]
    %v1585 = vld [vmem:[%s7 + $0x1c] sm:$0xf]
    %v1586 = vld [vmem:[%s7 + $0x20] sm:$0xf]
    %v1587 = vld [vmem:[%s7 + $0x24] sm:$0xf]
    %v1588 = vld [vmem:[%s7 + $0x28] sm:$0xf]
    %v1589 = vld [vmem:[%s7 + $0x2c] sm:$0xf]
    %v1590 = vld [vmem:[%s7 + $0x30] sm:$0xf]
    %v1591 = vld [vmem:[%s7 + $0x34] sm:$0xf]
    %v1592 = vld [vmem:[%s7 + $0x38] sm:$0xf]
    %v1593 = vld [vmem:[%s7 + $0x3c] sm:$0xf]
    %v1594 = vld [vmem:[%s8] sm:$0x1]
    %v1596 = vlaneseq
    %v1597 = vshrl.u32 %v1596, 7
    %v1598 = vsub.s32 0, %v1597
    %v1599 = vrot.slane %v1594, %v1598
    %v1617 = vunpack.c.l.b16 %v1578
    %v1618 = vunpack.c.l.b16 %v1579
    %v1619 = vunpack.c.l.b16 %v1580
    %v1620 = vunpack.c.l.b16 %v1581
    %v1621 = vunpack.c.l.b16 %v1582
    %v1622 = vunpack.c.l.b16 %v1583
    %v1623 = vunpack.c.l.b16 %v1584
    %v1624 = vunpack.c.l.b16 %v1585
    %v1625 = vunpack.c.l.b16 %v1586
    %v1626 = vunpack.c.l.b16 %v1587
    %v1627 = vunpack.c.l.b16 %v1588
    %v1628 = vunpack.c.l.b16 %v1589
    %v1629 = vunpack.c.l.b16 %v1590
    %v1630 = vunpack.c.l.b16 %v1591
    %v1631 = vunpack.c.l.b16 %v1592
    %v1632 = vunpack.c.l.b16 %v1593
    %v1633 = vpack.c.b16 %v1618, %v1617
    %v1634 = vpack.c.b16 %v1620, %v1619
    %v1635 = vpack.c.b16 %v1622, %v1621
    %v1636 = vpack.c.b16 %v1624, %v1623
    %v1637 = vpack.c.b16 %v1626, %v1625
    %v1638 = vpack.c.b16 %v1628, %v1627
    %v1639 = vpack.c.b16 %v1630, %v1629
    %v1640 = vpack.c.b16 %v1632, %v1631
    %1649 = vmatprep.subr.bf16.mxu0 0
    %1650 = vmatpush1.bf16.msra.mxu0 %v1640
    %1651 = vmatprep.subr.bf16.mxu0 0
    %1652 = vmatpush1.bf16.msra.mxu0 %v1639
    %1653 = vmatprep.subr.bf16.mxu0 0
    %1654 = vmatpush1.bf16.msra.mxu0 %v1638
    %1655 = vmatprep.subr.bf16.mxu0 0
    %1656 = vmatpush1.bf16.msra.mxu0 %v1637
    %1657 = vmatprep.subr.bf16.mxu0 0
    %1658 = vmatpush1.bf16.msra.mxu0 %v1636
    %1659 = vmatprep.subr.bf16.mxu0 0
    %1660 = vmatpush1.bf16.msra.mxu0 %v1635
    %1661 = vmatprep.subr.bf16.mxu0 0
    %1662 = vmatpush1.bf16.msra.mxu0 %v1634
    %1663 = vmatprep.subr.bf16.mxu0 0
    %1664 = vmatpush1.bf16.msra.mxu0 %v1633
    %1665 = vmatprep.subr.bf16.mxu0 0
    %1666 = vmatpush2.bf16.msra.mxu0 0
    %1667 = vmatprep.subr.bf16.mxu0 0
    %1668 = vmatpush2.bf16.msra.mxu0 0
    %1669 = vmatprep.subr.bf16.mxu0 0
    %1670 = vmatpush2.bf16.msra.mxu0 0
    %1671 = vmatprep.subr.bf16.mxu0 0
    %1672 = vmatpush2.bf16.msra.mxu0 0
    %1673 = vmatprep.subr.bf16.mxu0 0
    %1674 = vmatpush2.bf16.msra.mxu0 0
    %1675 = vmatprep.subr.bf16.mxu0 0
    %1676 = vmatpush2.bf16.msra.mxu0 0
    %1677 = vmatprep.subr.bf16.mxu0 0
    %1678 = vmatpush2.bf16.msra.mxu0 0
    %1679 = vmatprep.subr.bf16.mxu0 0
    %1680 = vmatpush2.bf16.msra.mxu0 0
    %1681 = vmatprep.mubr.bf16.mxu0 0
    %1682 = vmatmul.mubr.bf16.gmra.mxu0 %v1577
    %v1683 = vpop.f32.mrf.mxu0
    %v1684 = vadd.f32 %v1599, %v1683
    %v1685 = vpop.f32.mrf.mxu0
    %v1686 = vpop.f32.mrf.mxu0
    %v1687 = vpop.f32.mrf.mxu0
    %1688 = vdwg.mxu0
    %vm1689 = vcmask 64512
    %1690 = vst.msk [vmem:[%s9] sm:$0xff] %vm1689, %v1684
    // Predicated region
    $region42: #{lstm_forward_pallas.1} parent=1 // pred_check
      _
    $region43: #{lstm_forward_pallas.1} parent=1 // pred_check_branch
      %1692 = sbr.rel (0) target = $region45
    $region44: #{lstm_forward_pallas.1} parent=1 // pred_region
      _
    $region45: #{lstm_forward_pallas.1} parent=1 // pred_fallthru
      _
    // Predicated region
    $region46: #{lstm_forward_pallas.1} parent=1 // pred_check
      _
    $region47: #{lstm_forward_pallas.1} parent=1 // pred_check_branch
      %1694 = sbr.rel (0) target = $region49
    $region48: #{lstm_forward_pallas.1} parent=1 // pred_region
      _
    $region49: #{lstm_forward_pallas.1} parent=1 // pred_fallthru
      _
    %1695 = vsyncpa [#allocation4], 1

</llo_original>
